<compile_context>
chip_gen: v6e
topology: v6e:2x2x1
jax: 0.10.0
libtpu: 0.0.40
codegen_flags: <defaults>
</compile_context>

<pallas_src>
import jax
import jax.numpy as jnp
import numpy as np
from jax import lax
from jax.experimental import pallas as pl
from jax.experimental.pallas import tpu as pltpu


def _make_kernel(K, L, compute_dtype):
    """Fused forward kernel for one batch tile (grid axis = batch tiles)."""
    P = K // 2

    def kernel(pool_ref, x_ref,
               w1o_ref, w1g_ref, b1o_ref, b1g_ref,
               w2o_ref, w2g_ref, b2o_ref, b2g_ref,
               w3o_ref, w3g_ref, b3o_ref, b3g_ref,
               wl1_ref, wl2_ref, bl1_ref, bl2_ref,
               eps_ref, out_ref):
        N = x_ref.shape[0]                       # Bt * L rows in this step's slab

        # Per-tap boundary masks: row r of the slab is batch element r // L at position r % L.
        # A tap shifted by s = t - P is valid iff 0 <= (r % L) + s < L; otherwise the rolled row
        # would come from the zero padding at a sequence edge or from a neighbouring batch
        # element, so it is zeroed.  O(N) VPU work, computed once per grid step.
        pos = lax.broadcasted_iota(jnp.int32, (N, 1), 0) % L
        tap_mask = {}
        for t in range(K):                       # static, tiny K
            s = t - P
            if s != 0:
                valid = jnp.logical_and(pos + s >= 0, pos + s < L)
                tap_mask[s] = jnp.where(valid, jnp.float32(1.0), jnp.float32(0.0))

        def conv_glu(h, wo_ref, wg_ref, bo_ref, bg_ref):
            # im2col along channels: shifted views via sublane roll + mask (XLU/VPU, O(N*C)),
            # then ONE matmul per GLU half with contraction dim K*Cin.
            h32 = h.astype(jnp.float32)
            views = []
            for t in range(K):
                s = t - P
                if s == 0:
                    views.append(h32)
                else:
                    shifted = pltpu.roll(h32, (-s) % N, axis=0)   # rows r -> h[r + s]
                    views.append(shifted * tap_mask[s])
            hs = jnp.concatenate(views, axis=1).astype(compute_dtype)   # (N, K*Cin)
            out = jnp.dot(hs, wo_ref[...], preferred_element_type=jnp.float32) + bo_ref[...]
            gate = jnp.dot(hs, wg_ref[...], preferred_element_type=jnp.float32) + bg_ref[...]
            return out * jax.nn.sigmoid(gate)                     # GLU, f32 elementwise

        # ---- conv1/conv2/conv3 + GLU (Dropout is identity in eval mode) ----
        h = conv_glu(x_ref[...], w1o_ref, w1g_ref, b1o_ref, b1g_ref)    # (N, nf)
        h = conv_glu(h, w2o_ref, w2g_ref, b2o_ref, b2g_ref)             # (N, 2nf)
        h = conv_glu(h, w3o_ref, w3g_ref, b3o_ref, b3g_ref)             # (N, 3nf)

        # ---- AdaptiveAvgPool1d(1): 0/1 block-row matmul (exact) scaled by 1/L in f32 ----
        pooled = jnp.dot(pool_ref[...], h.astype(compute_dtype),
                         preferred_element_type=jnp.float32) * (1.0 / L)    # (Bt, H)

        # ---- layer1 / layer2: Linear + ReLU (weights pre-padded to the 128-lane output) ----
        p = pooled.astype(compute_dtype)
        o1 = jnp.maximum(
            jnp.dot(p, wl1_ref[...], preferred_element_type=jnp.float32) + bl1_ref[...], 0.0)
        o2 = jnp.maximum(
            jnp.dot(p, wl2_ref[...], preferred_element_type=jnp.float32) + bl2_ref[...], 0.0)

        # ---- reparametrize: eps * exp(0.5 * logvar) + mean ----
        out_ref[0] = eps_ref[...] * jnp.exp(0.5 * o2) + o1
        out_ref[1] = o1
        out_ref[2] = o2

    return kernel


def _batch_tile(batch, length, max_rows):
    """Batch elements per grid step.

    Big tiles amortize the ~0.35us/step grid+DMA overhead and grow the MXU M dimension
    (activations are tiny now that the shift matrices are gone, so VMEM is not the limit).
    Once the batch is large enough we keep >= 2 steps so v7x's second TensorCore gets work via
    the "parallel" batch axis; on v5e/v6e (1 TC) the extra steps are cheap.
    """
    rows = batch * length
    if rows <= 512 or batch < 2:
        return batch                                   # single step; too small to split
    bt = max(1, min(max_rows // max(length, 1), -(-batch // 2)))   # <= max_rows rows, >= 2 steps
    if bt < batch:
        bt = max(8, (bt // 8) * 8)                     # multi-step blocks stay sublane-aligned
    return min(bt, batch)


def cnn_forward(x, params, eps, k_size, *, compute_dtype=jnp.bfloat16, max_rows=2048):
    """x: (B, embedding_dim, L) float32 (PyTorch NCL). Returns (output, output1, output2)."""
    B, E, L = x.shape
    K = k_size
    assert K % 2 == 1, "odd kernel size expected (padding = k_size // 2 keeps length)"

    nf = params["w2"].shape[1]            # conv2 in_channels == num_filters
    H = 3 * nf                            # pooled feature width == head width
    Hp = ((H + 127) // 128) * 128         # lane-dense (unmasked vst) output width

    Bt = _batch_tile(B, L, max_rows)
    steps = -(-B // Bt)
    Bp = steps * Bt                       # padded batch
    N = Bt * L                            # rows per grid step (batch-tile slab)

    # ---- conv weights -> im2col (K*Cin, Cout) matrices, pre-split into GLU out/gate halves ----
    def conv_w(w):
        cout = w.shape[0]
        w2 = jnp.transpose(w, (2, 1, 0)).reshape(-1, cout)        # [t*Cin + c, o] = w[o, c, t]
        half = cout // 2
        return w2[:, :half].astype(compute_dtype), w2[:, half:].astype(compute_dtype)

    def conv_b(b):
        half = b.shape[0] // 2
        return (b[:half][None, :].astype(jnp.float32), b[half:][None, :].astype(jnp.float32))

    w1o, w1g = conv_w(params["w1"]); b1o, b1g = conv_b(params["b1"])
    w2o, w2g = conv_w(params["w2"]); b2o, b2g = conv_b(params["b2"])
    w3o, w3g = conv_w(params["w3"]); b3o, b3g = conv_b(params["b3"])

    # ---- head weights: (H, Hp) zero-padded so o1/o2/out are stored as full 128-lane rows ----
    pad_w = lambda w: jnp.pad(w.T, ((0, 0), (0, Hp - H))).astype(compute_dtype)
    pad_b = lambda b: jnp.pad(b, (0, Hp - H))[None, :].astype(jnp.float32)
    wl1, wl2 = pad_w(params["wl1"]), pad_w(params["wl2"])
    bl1, bl2 = pad_b(params["bl1"]), pad_b(params["bl2"])

    # ---- pooling matrix: 0/1 block rows (exact in bf16); divided by L inside the kernel ----
    pool01 = jnp.asarray(np.kron(np.eye(Bt, dtype=np.float32), np.ones((1, L), np.float32)),
                         dtype=compute_dtype)                      # (Bt, N)

    # ---- inputs: (B, E, L) -> row-stacked (Bp*L, E) slab; eps -> (Bp, Hp) ----
    x2d = jnp.transpose(x, (0, 2, 1)).reshape(B * L, E)
    x2d = jnp.pad(x2d, ((0, (Bp - B) * L), (0, 0))).astype(compute_dtype)
    epsp = jnp.pad(eps, ((0, Bp - B), (0, Hp - H))).astype(jnp.float32)

    full = lambda a: pl.BlockSpec(a.shape, lambda i: (0,) * a.ndim)
    invariants = [pool01, w1o, w1g, b1o, b1g, w2o, w2g, b2o, b2g,
                  w3o, w3g, b3o, b3g, wl1, wl2, bl1, bl2]

    grid_spec = pltpu.PrefetchScalarGridSpec(
        num_scalar_prefetch=0,
        grid=(steps,),
        in_specs=[
            full(pool01),
            pl.BlockSpec((N, E), lambda i: (i, 0)),               # this batch tile's rows
            full(w1o), full(w1g), full(b1o), full(b1g),
            full(w2o), full(w2g), full(b2o), full(b2g),
            full(w3o), full(w3g), full(b3o), full(b3g),
            full(wl1), full(wl2), full(bl1), full(bl2),
            pl.BlockSpec((Bt, Hp), lambda i: (i, 0)),             # eps
        ],
        out_specs=pl.BlockSpec((3, Bt, Hp), lambda i: (0, i, 0)),
    )

    # ---- advisory cost estimate (grid-invariant inputs counted once) ----
    cin_couts = ((E, 2 * nf), (nf, 4 * nf), (2 * nf, 6 * nf))
    conv_flops = sum(2 * N * (K * ci) * co for ci, co in cin_couts)
    flops = steps * (conv_flops + 2 * Bt * N * H + 2 * 2 * Bt * H * Hp)
    transcend = steps * (6 * nf * N + Bt * H)
    nbytes = lambda a: int(a.size) * a.dtype.itemsize
    bytes_accessed = (nbytes(x2d) + nbytes(epsp) + 4 * 3 * Bp * Hp
                      + sum(nbytes(a) for a in invariants))

    combined = pl.pallas_call(
        _make_kernel(K, L, compute_dtype),
        grid_spec=grid_spec,
        out_shape=jax.ShapeDtypeStruct((3, Bp, Hp), jnp.float32),
        compiler_params=pltpu.CompilerParams(dimension_semantics=("parallel",)),
        cost_estimate=pl.CostEstimate(flops=int(flops),
                                      transcendentals=int(transcend),
                                      bytes_accessed=int(bytes_accessed)),
    )(pool01, x2d, w1o, w1g, b1o, b1g, w2o, w2g, b2o, b2g,
      w3o, w3g, b3o, b3g, wl1, wl2, bl1, bl2, epsp)

    return combined[0, :B, :H], combined[1, :B, :H], combined[2, :B, :H]


# ----------------------------- pure-JAX reference -----------------------------
def cnn_reference(x, p, eps, k_size):
    P = k_size // 2

    def conv1d(h, w, b):
        y = lax.conv_general_dilated(h, w, window_strides=(1,), padding=[(P, P)],
                                     dimension_numbers=("NCH", "OIH", "NCH"))
        return y + b[None, :, None]

    def glu(h):
        half = h.shape[1] // 2
        return h[:, :half] * jax.nn.sigmoid(h[:, half:])

    h = glu(conv1d(x, p["w1"], p["b1"]))
    h = glu(conv1d(h, p["w2"], p["b2"]))
    h = glu(conv1d(h, p["w3"], p["b3"]))
    pooled = h.mean(axis=2)
    o1 = jax.nn.relu(pooled @ p["wl1"].T + p["bl1"])
    o2 = jax.nn.relu(pooled @ p["wl2"].T + p["bl2"])
    out = eps * jnp.exp(0.5 * o2) + o1
    return out, o1, o2


def init_params(key, num_filters, k_size, embedding_dim):
    nf = num_filters
    ks = jax.random.split(key, 10)
    w = lambda k, s: 0.1 * jax.random.normal(k, s, jnp.float32)
    return dict(
        w1=w(ks[0], (2 * nf, embedding_dim, k_size)), b1=w(ks[1], (2 * nf,)),
        w2=w(ks[2], (4 * nf, nf, k_size)),            b2=w(ks[3], (4 * nf,)),
        w3=w(ks[4], (6 * nf, 2 * nf, k_size)),        b3=w(ks[5], (6 * nf,)),
        wl1=w(ks[6], (3 * nf, 3 * nf)),               bl1=w(ks[7], (3 * nf,)),
        wl2=w(ks[8], (3 * nf, 3 * nf)),               bl2=w(ks[9], (3 * nf,)),
    )


if __name__ == "__main__":
    B, E, L = 2, 8, 16          # batch, embedding_dim, sequence length
    num_filters, k_size = 16, 3

    key = jax.random.PRNGKey(0)
    k_p, k_x, k_eps = jax.random.split(key, 3)
    params = init_params(k_p, num_filters, k_size, E)
    x = jax.random.normal(k_x, (B, E, L), jnp.float32)
    # deterministic stand-in for torch.cuda.FloatTensor(...).normal_(0, 0.1)
    eps = 0.1 * jax.random.normal(k_eps, (B, 3 * num_filters), jnp.float32)

    fwd = jax.jit(cnn_forward, static_argnames=("k_size", "compute_dtype", "max_rows"))

    # 1) default bf16-matmul path (native MXU dtype on v5e/v6e/v7x)
    out = fwd(x, params, eps, k_size=k_size)
    jax.block_until_ready(out)
    ref = cnn_reference(x, params, eps, k_size)
    for a, b in zip(out, ref):
        assert a.shape == b.shape
        assert np.allclose(np.asarray(a), np.asarray(b), atol=3e-2, rtol=3e-2)

    # 2) f32-matmul path: exact-semantics check against the reference
    out32 = fwd(x, params, eps, k_size=k_size, compute_dtype=jnp.float32)
    jax.block_until_ready(out32)
    for a, b in zip(out32, ref):
        assert np.allclose(np.asarray(a), np.asarray(b), atol=1e-4, rtol=1e-4)

    # 3) multi-step grid (>= 2 "parallel" steps + padded final batch tile)
    B2 = 44
    k_x2, k_e2 = jax.random.split(jax.random.PRNGKey(1))
    x2 = jax.random.normal(k_x2, (B2, E, L), jnp.float32)
    eps2 = 0.1 * jax.random.normal(k_e2, (B2, 3 * num_filters), jnp.float32)
    out2 = fwd(x2, params, eps2, k_size=k_size)
    jax.block_until_ready(out2)
    ref2 = cnn_reference(x2, params, eps2, k_size)
    for a, b in zip(out2, ref2):
        assert np.allclose(np.asarray(a), np.asarray(b), atol=3e-2, rtol=3e-2)

    print("KERNEL_OK")
</pallas_src>

<mosaic_0001>
module attributes {stable_mosaic.version = 11 : i64} {
  func.func @kernel(%arg0: i32, %arg1: memref<2x32xbf16, #tpu.memory_space<vmem>>, %arg2: memref<32x8xbf16, #tpu.memory_space<vmem>>, %arg3: memref<24x16xbf16, #tpu.memory_space<vmem>>, %arg4: memref<24x16xbf16, #tpu.memory_space<vmem>>, %arg5: memref<1x16xf32, #tpu.memory_space<vmem>>, %arg6: memref<1x16xf32, #tpu.memory_space<vmem>>, %arg7: memref<48x32xbf16, #tpu.memory_space<vmem>>, %arg8: memref<48x32xbf16, #tpu.memory_space<vmem>>, %arg9: memref<1x32xf32, #tpu.memory_space<vmem>>, %arg10: memref<1x32xf32, #tpu.memory_space<vmem>>, %arg11: memref<96x48xbf16, #tpu.memory_space<vmem>>, %arg12: memref<96x48xbf16, #tpu.memory_space<vmem>>, %arg13: memref<1x48xf32, #tpu.memory_space<vmem>>, %arg14: memref<1x48xf32, #tpu.memory_space<vmem>>, %arg15: memref<48x128xbf16, #tpu.memory_space<vmem>>, %arg16: memref<48x128xbf16, #tpu.memory_space<vmem>>, %arg17: memref<1x128xf32, #tpu.memory_space<vmem>>, %arg18: memref<1x128xf32, #tpu.memory_space<vmem>>, %arg19: memref<2x128xf32, #tpu.memory_space<vmem>>, %arg20: memref<3x2x128xf32, #tpu.memory_space<vmem>>) attributes {dimension_semantics = [#tpu.dimension_semantics<parallel>], iteration_bounds = array<i64: 1>, scalar_prefetch = 0 : i64, scratch_operands = 0 : i64, tpu.core_type = #tpu.core_type<tc>, window_params = [{pipeline_mode = #tpu.pipeline_mode<synchronous>, transform_indices = @transform_0, window_bounds = array<i64: 2, 32>}, {transform_indices = @transform_1, window_bounds = array<i64: 32, 8>}, {pipeline_mode = #tpu.pipeline_mode<synchronous>, transform_indices = @transform_2, window_bounds = array<i64: 24, 16>}, {pipeline_mode = #tpu.pipeline_mode<synchronous>, transform_indices = @transform_3, window_bounds = array<i64: 24, 16>}, {pipeline_mode = #tpu.pipeline_mode<synchronous>, transform_indices = @transform_4, window_bounds = array<i64: 1, 16>}, {pipeline_mode = #tpu.pipeline_mode<synchronous>, transform_indices = @transform_5, window_bounds = array<i64: 1, 16>}, {pipeline_mode = #tpu.pipeline_mode<synchronous>, transform_indices = @transform_6, window_bounds = array<i64: 48, 32>}, {pipeline_mode = #tpu.pipeline_mode<synchronous>, transform_indices = @transform_7, window_bounds = array<i64: 48, 32>}, {pipeline_mode = #tpu.pipeline_mode<synchronous>, transform_indices = @transform_8, window_bounds = array<i64: 1, 32>}, {pipeline_mode = #tpu.pipeline_mode<synchronous>, transform_indices = @transform_9, window_bounds = array<i64: 1, 32>}, {pipeline_mode = #tpu.pipeline_mode<synchronous>, transform_indices = @transform_10, window_bounds = array<i64: 96, 48>}, {pipeline_mode = #tpu.pipeline_mode<synchronous>, transform_indices = @transform_11, window_bounds = array<i64: 96, 48>}, {pipeline_mode = #tpu.pipeline_mode<synchronous>, transform_indices = @transform_12, window_bounds = array<i64: 1, 48>}, {pipeline_mode = #tpu.pipeline_mode<synchronous>, transform_indices = @transform_13, window_bounds = array<i64: 1, 48>}, {pipeline_mode = #tpu.pipeline_mode<synchronous>, transform_indices = @transform_14, window_bounds = array<i64: 48, 128>}, {pipeline_mode = #tpu.pipeline_mode<synchronous>, transform_indices = @transform_15, window_bounds = array<i64: 48, 128>}, {pipeline_mode = #tpu.pipeline_mode<synchronous>, transform_indices = @transform_16, window_bounds = array<i64: 1, 128>}, {pipeline_mode = #tpu.pipeline_mode<synchronous>, transform_indices = @transform_17, window_bounds = array<i64: 1, 128>}, {transform_indices = @transform_18, window_bounds = array<i64: 2, 128>}, {transform_indices = @transform_19, window_bounds = array<i64: 3, 2, 128>}]} {
    %0 = tpu.iota {dimensions = array<i32: 0>} : vector<32x1xi32>
    %c16_i32 = arith.constant 16 : i32
    %c0_i32 = arith.constant 0 : i32
    %1 = arith.cmpi eq, %c16_i32, %c0_i32 : i32
    %c1_i32 = arith.constant 1 : i32
    %2 = arith.select %1, %c1_i32, %c16_i32 : i32
    %3 = vector.broadcast %2 : i32 to vector<32x1xi32>
    %4 = arith.remsi %0, %3 : vector<32x1xi32>
    %c0_i32_0 = arith.constant 0 : i32
    %5 = vector.broadcast %c0_i32_0 : i32 to vector<32x1xi32>
    %6 = arith.cmpi ne, %4, %5 : vector<32x1xi32>
    %c0_i32_1 = arith.constant 0 : i32
    %7 = vector.broadcast %c0_i32_1 : i32 to vector<32x1xi32>
    %8 = arith.cmpi slt, %4, %7 : vector<32x1xi32>
    %c0_i32_2 = arith.constant 0 : i32
    %9 = arith.cmpi slt, %2, %c0_i32_2 : i32
    %10 = vector.broadcast %9 : i1 to vector<32x1xi1>
    %11 = vector.broadcast %10 : vector<32x1xi1> to vector<32x1xi1>
    %12 = arith.xori %8, %11 : vector<32x1xi1>
    %13 = arith.andi %12, %6 : vector<32x1xi1>
    %14 = vector.broadcast %2 : i32 to vector<32x1xi32>
    %15 = arith.addi %4, %14 : vector<32x1xi32>
    %16 = arith.select %13, %15, %4 : vector<32x1xi1>, vector<32x1xi32>
    %c-1_i32 = arith.constant -1 : i32
    %17 = vector.broadcast %c-1_i32 : i32 to vector<32x1xi32>
    %18 = arith.addi %16, %17 : vector<32x1xi32>
    %c0_i32_3 = arith.constant 0 : i32
    %19 = vector.broadcast %c0_i32_3 : i32 to vector<32x1xi32>
    %20 = arith.cmpi sge, %18, %19 : vector<32x1xi32>
    %c-1_i32_4 = arith.constant -1 : i32
    %21 = vector.broadcast %c-1_i32_4 : i32 to vector<32x1xi32>
    %22 = arith.addi %16, %21 : vector<32x1xi32>
    %c16_i32_5 = arith.constant 16 : i32
    %23 = vector.broadcast %c16_i32_5 : i32 to vector<32x1xi32>
    %24 = arith.cmpi slt, %22, %23 : vector<32x1xi32>
    %25 = arith.andi %20, %24 : vector<32x1xi1>
    %cst = arith.constant 1.000000e+00 : f32
    %cst_6 = arith.constant 0.000000e+00 : f32
    %26 = vector.broadcast %cst : f32 to vector<32x1xf32>
    %27 = vector.broadcast %cst_6 : f32 to vector<32x1xf32>
    %28 = arith.select %25, %26, %27 : vector<32x1xi1>, vector<32x1xf32>
    %c1_i32_7 = arith.constant 1 : i32
    %29 = vector.broadcast %c1_i32_7 : i32 to vector<32x1xi32>
    %30 = arith.addi %16, %29 : vector<32x1xi32>
    %c0_i32_8 = arith.constant 0 : i32
    %31 = vector.broadcast %c0_i32_8 : i32 to vector<32x1xi32>
    %32 = arith.cmpi sge, %30, %31 : vector<32x1xi32>
    %c1_i32_9 = arith.constant 1 : i32
    %33 = vector.broadcast %c1_i32_9 : i32 to vector<32x1xi32>
    %34 = arith.addi %16, %33 : vector<32x1xi32>
    %c16_i32_10 = arith.constant 16 : i32
    %35 = vector.broadcast %c16_i32_10 : i32 to vector<32x1xi32>
    %36 = arith.cmpi slt, %34, %35 : vector<32x1xi32>
    %37 = arith.andi %32, %36 : vector<32x1xi1>
    %cst_11 = arith.constant 1.000000e+00 : f32
    %cst_12 = arith.constant 0.000000e+00 : f32
    %38 = vector.broadcast %cst_11 : f32 to vector<32x1xf32>
    %39 = vector.broadcast %cst_12 : f32 to vector<32x1xf32>
    %40 = arith.select %37, %38, %39 : vector<32x1xi1>, vector<32x1xf32>
    %c0 = arith.constant 0 : index
    %c0_13 = arith.constant 0 : index
    %41 = vector.load %arg2[%c0, %c0_13] : memref<32x8xbf16, #tpu.memory_space<vmem>>, vector<32x8xbf16>
    %42 = arith.extf %41 : vector<32x8xbf16> to vector<32x8xf32>
    %c1_i32_14 = arith.constant 1 : i32
    %43 = tpu.dynamic_rotate %42 by %c1_i32_14 dim 0 : vector<32x8xf32>, i32 -> vector<32x8xf32>
    %44 = vector.broadcast %28 : vector<32x1xf32> to vector<32x8xf32>
    %45 = arith.mulf %43, %44 : vector<32x8xf32>
    %c31_i32 = arith.constant 31 : i32
    %46 = tpu.dynamic_rotate %42 by %c31_i32 dim 0 : vector<32x8xf32>, i32 -> vector<32x8xf32>
    %47 = vector.broadcast %40 : vector<32x1xf32> to vector<32x8xf32>
    %48 = arith.mulf %46, %47 : vector<32x8xf32>
    %49 = tpu.concatenate %45, %42, %48 in 1 : vector<32x8xf32>, vector<32x8xf32>, vector<32x8xf32> -> vector<32x24xf32>
    %50 = arith.truncf %49 : vector<32x24xf32> to vector<32x24xbf16>
    %c0_15 = arith.constant 0 : index
    %c0_16 = arith.constant 0 : index
    %51 = vector.load %arg3[%c0_15, %c0_16] : memref<24x16xbf16, #tpu.memory_space<vmem>>, vector<24x16xbf16>
    %cst_17 = arith.constant dense<0.000000e+00> : vector<32x16xf32>
    %52 = tpu.matmul %50, %51, %cst_17 {dimension_numbers = #tpu.dot_dimension_numbers<[1], [0], [0], [1], [0, 0, 1, 1], [], []>} : vector<32x24xbf16>, vector<24x16xbf16>, vector<32x16xf32> -> vector<32x16xf32>
    %c0_18 = arith.constant 0 : index
    %c0_19 = arith.constant 0 : index
    %53 = vector.load %arg5[%c0_18, %c0_19] : memref<1x16xf32, #tpu.memory_space<vmem>>, vector<1x16xf32>
    %54 = vector.broadcast %53 : vector<1x16xf32> to vector<32x16xf32>
    %55 = arith.addf %52, %54 : vector<32x16xf32>
    %c0_20 = arith.constant 0 : index
    %c0_21 = arith.constant 0 : index
    %56 = vector.load %arg4[%c0_20, %c0_21] : memref<24x16xbf16, #tpu.memory_space<vmem>>, vector<24x16xbf16>
    %cst_22 = arith.constant dense<0.000000e+00> : vector<32x16xf32>
    %57 = tpu.matmul %50, %56, %cst_22 {dimension_numbers = #tpu.dot_dimension_numbers<[1], [0], [0], [1], [0, 0, 1, 1], [], []>} : vector<32x24xbf16>, vector<24x16xbf16>, vector<32x16xf32> -> vector<32x16xf32>
    %c0_23 = arith.constant 0 : index
    %c0_24 = arith.constant 0 : index
    %58 = vector.load %arg6[%c0_23, %c0_24] : memref<1x16xf32, #tpu.memory_space<vmem>>, vector<1x16xf32>
    %59 = vector.broadcast %58 : vector<1x16xf32> to vector<32x16xf32>
    %60 = arith.addf %57, %59 : vector<32x16xf32>
    %61 = arith.negf %60 : vector<32x16xf32>
    %62 = math.exp %61 : vector<32x16xf32>
    %cst_25 = arith.constant 1.000000e+00 : f32
    %63 = vector.broadcast %cst_25 : f32 to vector<32x16xf32>
    %64 = arith.addf %63, %62 : vector<32x16xf32>
    %65 = arith.divf %63, %64 : vector<32x16xf32>
    %66 = arith.mulf %55, %65 : vector<32x16xf32>
    %c1_i32_26 = arith.constant 1 : i32
    %67 = tpu.dynamic_rotate %66 by %c1_i32_26 dim 0 : vector<32x16xf32>, i32 -> vector<32x16xf32>
    %68 = vector.broadcast %28 : vector<32x1xf32> to vector<32x16xf32>
    %69 = arith.mulf %67, %68 : vector<32x16xf32>
    %c31_i32_27 = arith.constant 31 : i32
    %70 = tpu.dynamic_rotate %66 by %c31_i32_27 dim 0 : vector<32x16xf32>, i32 -> vector<32x16xf32>
    %71 = vector.broadcast %40 : vector<32x1xf32> to vector<32x16xf32>
    %72 = arith.mulf %70, %71 : vector<32x16xf32>
    %73 = tpu.concatenate %69, %66, %72 in 1 : vector<32x16xf32>, vector<32x16xf32>, vector<32x16xf32> -> vector<32x48xf32>
    %74 = arith.truncf %73 : vector<32x48xf32> to vector<32x48xbf16>
    %c0_28 = arith.constant 0 : index
    %c0_29 = arith.constant 0 : index
    %75 = vector.load %arg7[%c0_28, %c0_29] : memref<48x32xbf16, #tpu.memory_space<vmem>>, vector<48x32xbf16>
    %cst_30 = arith.constant dense<0.000000e+00> : vector<32x32xf32>
    %76 = tpu.matmul %74, %75, %cst_30 {dimension_numbers = #tpu.dot_dimension_numbers<[1], [0], [0], [1], [0, 0, 1, 1], [], []>} : vector<32x48xbf16>, vector<48x32xbf16>, vector<32x32xf32> -> vector<32x32xf32>
    %c0_31 = arith.constant 0 : index
    %c0_32 = arith.constant 0 : index
    %77 = vector.load %arg9[%c0_31, %c0_32] : memref<1x32xf32, #tpu.memory_space<vmem>>, vector<1x32xf32>
    %78 = vector.broadcast %77 : vector<1x32xf32> to vector<32x32xf32>
    %79 = arith.addf %76, %78 : vector<32x32xf32>
    %c0_33 = arith.constant 0 : index
    %c0_34 = arith.constant 0 : index
    %80 = vector.load %arg8[%c0_33, %c0_34] : memref<48x32xbf16, #tpu.memory_space<vmem>>, vector<48x32xbf16>
    %cst_35 = arith.constant dense<0.000000e+00> : vector<32x32xf32>
    %81 = tpu.matmul %74, %80, %cst_35 {dimension_numbers = #tpu.dot_dimension_numbers<[1], [0], [0], [1], [0, 0, 1, 1], [], []>} : vector<32x48xbf16>, vector<48x32xbf16>, vector<32x32xf32> -> vector<32x32xf32>
    %c0_36 = arith.constant 0 : index
    %c0_37 = arith.constant 0 : index
    %82 = vector.load %arg10[%c0_36, %c0_37] : memref<1x32xf32, #tpu.memory_space<vmem>>, vector<1x32xf32>
    %83 = vector.broadcast %82 : vector<1x32xf32> to vector<32x32xf32>
    %84 = arith.addf %81, %83 : vector<32x32xf32>
    %85 = arith.negf %84 : vector<32x32xf32>
    %86 = math.exp %85 : vector<32x32xf32>
    %cst_38 = arith.constant 1.000000e+00 : f32
    %87 = vector.broadcast %cst_38 : f32 to vector<32x32xf32>
    %88 = arith.addf %87, %86 : vector<32x32xf32>
    %89 = arith.divf %87, %88 : vector<32x32xf32>
    %90 = arith.mulf %79, %89 : vector<32x32xf32>
    %c1_i32_39 = arith.constant 1 : i32
    %91 = tpu.dynamic_rotate %90 by %c1_i32_39 dim 0 : vector<32x32xf32>, i32 -> vector<32x32xf32>
    %92 = vector.broadcast %28 : vector<32x1xf32> to vector<32x32xf32>
    %93 = arith.mulf %91, %92 : vector<32x32xf32>
    %c31_i32_40 = arith.constant 31 : i32
    %94 = tpu.dynamic_rotate %90 by %c31_i32_40 dim 0 : vector<32x32xf32>, i32 -> vector<32x32xf32>
    %95 = vector.broadcast %40 : vector<32x1xf32> to vector<32x32xf32>
    %96 = arith.mulf %94, %95 : vector<32x32xf32>
    %97 = tpu.concatenate %93, %90, %96 in 1 : vector<32x32xf32>, vector<32x32xf32>, vector<32x32xf32> -> vector<32x96xf32>
    %98 = arith.truncf %97 : vector<32x96xf32> to vector<32x96xbf16>
    %c0_41 = arith.constant 0 : index
    %c0_42 = arith.constant 0 : index
    %99 = vector.load %arg11[%c0_41, %c0_42] : memref<96x48xbf16, #tpu.memory_space<vmem>>, vector<96x48xbf16>
    %cst_43 = arith.constant dense<0.000000e+00> : vector<32x48xf32>
    %100 = tpu.matmul %98, %99, %cst_43 {dimension_numbers = #tpu.dot_dimension_numbers<[1], [0], [0], [1], [0, 0, 1, 1], [], []>} : vector<32x96xbf16>, vector<96x48xbf16>, vector<32x48xf32> -> vector<32x48xf32>
    %c0_44 = arith.constant 0 : index
    %c0_45 = arith.constant 0 : index
    %101 = vector.load %arg13[%c0_44, %c0_45] : memref<1x48xf32, #tpu.memory_space<vmem>>, vector<1x48xf32>
    %102 = vector.broadcast %101 : vector<1x48xf32> to vector<32x48xf32>
    %103 = arith.addf %100, %102 : vector<32x48xf32>
    %c0_46 = arith.constant 0 : index
    %c0_47 = arith.constant 0 : index
    %104 = vector.load %arg12[%c0_46, %c0_47] : memref<96x48xbf16, #tpu.memory_space<vmem>>, vector<96x48xbf16>
    %cst_48 = arith.constant dense<0.000000e+00> : vector<32x48xf32>
    %105 = tpu.matmul %98, %104, %cst_48 {dimension_numbers = #tpu.dot_dimension_numbers<[1], [0], [0], [1], [0, 0, 1, 1], [], []>} : vector<32x96xbf16>, vector<96x48xbf16>, vector<32x48xf32> -> vector<32x48xf32>
    %c0_49 = arith.constant 0 : index
    %c0_50 = arith.constant 0 : index
    %106 = vector.load %arg14[%c0_49, %c0_50] : memref<1x48xf32, #tpu.memory_space<vmem>>, vector<1x48xf32>
    %107 = vector.broadcast %106 : vector<1x48xf32> to vector<32x48xf32>
    %108 = arith.addf %105, %107 : vector<32x48xf32>
    %109 = arith.negf %108 : vector<32x48xf32>
    %110 = math.exp %109 : vector<32x48xf32>
    %cst_51 = arith.constant 1.000000e+00 : f32
    %111 = vector.broadcast %cst_51 : f32 to vector<32x48xf32>
    %112 = arith.addf %111, %110 : vector<32x48xf32>
    %113 = arith.divf %111, %112 : vector<32x48xf32>
    %114 = arith.mulf %103, %113 : vector<32x48xf32>
    %c0_52 = arith.constant 0 : index
    %c0_53 = arith.constant 0 : index
    %115 = vector.load %arg1[%c0_52, %c0_53] : memref<2x32xbf16, #tpu.memory_space<vmem>>, vector<2x32xbf16>
    %116 = arith.truncf %114 : vector<32x48xf32> to vector<32x48xbf16>
    %cst_54 = arith.constant dense<0.000000e+00> : vector<2x48xf32>
    %117 = tpu.matmul %115, %116, %cst_54 {dimension_numbers = #tpu.dot_dimension_numbers<[1], [0], [0], [1], [0, 0, 1, 1], [], []>} : vector<2x32xbf16>, vector<32x48xbf16>, vector<2x48xf32> -> vector<2x48xf32>
    %cst_55 = arith.constant 6.250000e-02 : f32
    %118 = vector.broadcast %cst_55 : f32 to vector<2x48xf32>
    %119 = arith.mulf %117, %118 : vector<2x48xf32>
    %120 = arith.truncf %119 : vector<2x48xf32> to vector<2x48xbf16>
    %c0_56 = arith.constant 0 : index
    %c0_57 = arith.constant 0 : index
    %121 = vector.load %arg15[%c0_56, %c0_57] : memref<48x128xbf16, #tpu.memory_space<vmem>>, vector<48x128xbf16>
    %cst_58 = arith.constant dense<0.000000e+00> : vector<2x128xf32>
    %122 = tpu.matmul %120, %121, %cst_58 {dimension_numbers = #tpu.dot_dimension_numbers<[1], [0], [0], [1], [0, 0, 1, 1], [], []>} : vector<2x48xbf16>, vector<48x128xbf16>, vector<2x128xf32> -> vector<2x128xf32>
    %c0_59 = arith.constant 0 : index
    %c0_60 = arith.constant 0 : index
    %123 = vector.load %arg17[%c0_59, %c0_60] : memref<1x128xf32, #tpu.memory_space<vmem>>, vector<1x128xf32>
    %124 = vector.broadcast %123 : vector<1x128xf32> to vector<2x128xf32>
    %125 = arith.addf %122, %124 : vector<2x128xf32>
    %cst_61 = arith.constant 0.000000e+00 : f32
    %126 = vector.broadcast %cst_61 : f32 to vector<2x128xf32>
    %127 = arith.maximumf %125, %126 : vector<2x128xf32>
    %c0_62 = arith.constant 0 : index
    %c0_63 = arith.constant 0 : index
    %128 = vector.load %arg16[%c0_62, %c0_63] : memref<48x128xbf16, #tpu.memory_space<vmem>>, vector<48x128xbf16>
    %cst_64 = arith.constant dense<0.000000e+00> : vector<2x128xf32>
    %129 = tpu.matmul %120, %128, %cst_64 {dimension_numbers = #tpu.dot_dimension_numbers<[1], [0], [0], [1], [0, 0, 1, 1], [], []>} : vector<2x48xbf16>, vector<48x128xbf16>, vector<2x128xf32> -> vector<2x128xf32>
    %c0_65 = arith.constant 0 : index
    %c0_66 = arith.constant 0 : index
    %130 = vector.load %arg18[%c0_65, %c0_66] : memref<1x128xf32, #tpu.memory_space<vmem>>, vector<1x128xf32>
    %131 = vector.broadcast %130 : vector<1x128xf32> to vector<2x128xf32>
    %132 = arith.addf %129, %131 : vector<2x128xf32>
    %cst_67 = arith.constant 0.000000e+00 : f32
    %133 = vector.broadcast %cst_67 : f32 to vector<2x128xf32>
    %134 = arith.maximumf %132, %133 : vector<2x128xf32>
    %c0_68 = arith.constant 0 : index
    %c0_69 = arith.constant 0 : index
    %135 = vector.load %arg19[%c0_68, %c0_69] : memref<2x128xf32, #tpu.memory_space<vmem>>, vector<2x128xf32>
    %cst_70 = arith.constant 5.000000e-01 : f32
    %136 = vector.broadcast %cst_70 : f32 to vector<2x128xf32>
    %137 = arith.mulf %136, %134 : vector<2x128xf32>
    %138 = math.exp %137 : vector<2x128xf32>
    %139 = arith.mulf %135, %138 : vector<2x128xf32>
    %140 = arith.addf %139, %127 : vector<2x128xf32>
    %c0_71 = arith.constant 0 : index
    %c0_72 = arith.constant 0 : index
    %c0_73 = arith.constant 0 : index
    %141 = vector.load %arg20[%c0_71, %c0_72, %c0_73] : memref<3x2x128xf32, #tpu.memory_space<vmem>>, vector<1x2x128xf32>
    %142 = vector.shape_cast %141 : vector<1x2x128xf32> to vector<2x128xf32>
    %143 = vector.shape_cast %140 : vector<2x128xf32> to vector<1x2x128xf32>
    tpu.vector_store %arg20[%c0_71, %c0_72, %c0_73], %143 {strides = array<i32>} : memref<3x2x128xf32, #tpu.memory_space<vmem>>, vector<1x2x128xf32>,
    %c1 = arith.constant 1 : index
    %c0_74 = arith.constant 0 : index
    %c0_75 = arith.constant 0 : index
    %144 = vector.load %arg20[%c1, %c0_74, %c0_75] : memref<3x2x128xf32, #tpu.memory_space<vmem>>, vector<1x2x128xf32>
    %145 = vector.shape_cast %144 : vector<1x2x128xf32> to vector<2x128xf32>
    %146 = vector.shape_cast %127 : vector<2x128xf32> to vector<1x2x128xf32>
    tpu.vector_store %arg20[%c1, %c0_74, %c0_75], %146 {strides = array<i32>} : memref<3x2x128xf32, #tpu.memory_space<vmem>>, vector<1x2x128xf32>,
    %c2 = arith.constant 2 : index
    %c0_76 = arith.constant 0 : index
    %c0_77 = arith.constant 0 : index
    %147 = vector.load %arg20[%c2, %c0_76, %c0_77] : memref<3x2x128xf32, #tpu.memory_space<vmem>>, vector<1x2x128xf32>
    %148 = vector.shape_cast %147 : vector<1x2x128xf32> to vector<2x128xf32>
    %149 = vector.shape_cast %134 : vector<2x128xf32> to vector<1x2x128xf32>
    tpu.vector_store %arg20[%c2, %c0_76, %c0_77], %149 {strides = array<i32>} : memref<3x2x128xf32, #tpu.memory_space<vmem>>, vector<1x2x128xf32>,
    return
  }
  func.func @transform_0(%arg0: i32) -> (i32, i32) {
    %c0_i32 = arith.constant 0 : i32
    %c0_i32_0 = arith.constant 0 : i32
    %c0_i32_1 = arith.constant 0 : i32
    return %c0_i32, %c0_i32_0 : i32, i32
  }
  func.func @transform_1(%arg0: i32) -> (i32, i32) {
    %c0_i32 = arith.constant 0 : i32
    %c0_i32_0 = arith.constant 0 : i32
    return %arg0, %c0_i32 : i32, i32
  }
  func.func @transform_2(%arg0: i32) -> (i32, i32) {
    %c0_i32 = arith.constant 0 : i32
    %c0_i32_0 = arith.constant 0 : i32
    %c0_i32_1 = arith.constant 0 : i32
    return %c0_i32, %c0_i32_0 : i32, i32
  }
  func.func @transform_3(%arg0: i32) -> (i32, i32) {
    %c0_i32 = arith.constant 0 : i32
    %c0_i32_0 = arith.constant 0 : i32
    %c0_i32_1 = arith.constant 0 : i32
    return %c0_i32, %c0_i32_0 : i32, i32
  }
  func.func @transform_4(%arg0: i32) -> (i32, i32) {
    %c0_i32 = arith.constant 0 : i32
    %c0_i32_0 = arith.constant 0 : i32
    %c0_i32_1 = arith.constant 0 : i32
    return %c0_i32, %c0_i32_0 : i32, i32
  }
  func.func @transform_5(%arg0: i32) -> (i32, i32) {
    %c0_i32 = arith.constant 0 : i32
    %c0_i32_0 = arith.constant 0 : i32
    %c0_i32_1 = arith.constant 0 : i32
    return %c0_i32, %c0_i32_0 : i32, i32
  }
  func.func @transform_6(%arg0: i32) -> (i32, i32) {
    %c0_i32 = arith.constant 0 : i32
    %c0_i32_0 = arith.constant 0 : i32
    %c0_i32_1 = arith.constant 0 : i32
    return %c0_i32, %c0_i32_0 : i32, i32
  }
  func.func @transform_7(%arg0: i32) -> (i32, i32) {
    %c0_i32 = arith.constant 0 : i32
    %c0_i32_0 = arith.constant 0 : i32
    %c0_i32_1 = arith.constant 0 : i32
    return %c0_i32, %c0_i32_0 : i32, i32
  }
  func.func @transform_8(%arg0: i32) -> (i32, i32) {
    %c0_i32 = arith.constant 0 : i32
    %c0_i32_0 = arith.constant 0 : i32
    %c0_i32_1 = arith.constant 0 : i32
    return %c0_i32, %c0_i32_0 : i32, i32
  }
  func.func @transform_9(%arg0: i32) -> (i32, i32) {
    %c0_i32 = arith.constant 0 : i32
    %c0_i32_0 = arith.constant 0 : i32
    %c0_i32_1 = arith.constant 0 : i32
    return %c0_i32, %c0_i32_0 : i32, i32
  }
  func.func @transform_10(%arg0: i32) -> (i32, i32) {
    %c0_i32 = arith.constant 0 : i32
    %c0_i32_0 = arith.constant 0 : i32
    %c0_i32_1 = arith.constant 0 : i32
    return %c0_i32, %c0_i32_0 : i32, i32
  }
  func.func @transform_11(%arg0: i32) -> (i32, i32) {
    %c0_i32 = arith.constant 0 : i32
    %c0_i32_0 = arith.constant 0 : i32
    %c0_i32_1 = arith.constant 0 : i32
    return %c0_i32, %c0_i32_0 : i32, i32
  }
  func.func @transform_12(%arg0: i32) -> (i32, i32) {
    %c0_i32 = arith.constant 0 : i32
    %c0_i32_0 = arith.constant 0 : i32
    %c0_i32_1 = arith.constant 0 : i32
    return %c0_i32, %c0_i32_0 : i32, i32
  }
  func.func @transform_13(%arg0: i32) -> (i32, i32) {
    %c0_i32 = arith.constant 0 : i32
    %c0_i32_0 = arith.constant 0 : i32
    %c0_i32_1 = arith.constant 0 : i32
    return %c0_i32, %c0_i32_0 : i32, i32
  }
  func.func @transform_14(%arg0: i32) -> (i32, i32) {
    %c0_i32 = arith.constant 0 : i32
    %c0_i32_0 = arith.constant 0 : i32
    %c0_i32_1 = arith.constant 0 : i32
    return %c0_i32, %c0_i32_0 : i32, i32
  }
  func.func @transform_15(%arg0: i32) -> (i32, i32) {
    %c0_i32 = arith.constant 0 : i32
    %c0_i32_0 = arith.constant 0 : i32
    %c0_i32_1 = arith.constant 0 : i32
    return %c0_i32, %c0_i32_0 : i32, i32
  }
  func.func @transform_16(%arg0: i32) -> (i32, i32) {
    %c0_i32 = arith.constant 0 : i32
    %c0_i32_0 = arith.constant 0 : i32
    %c0_i32_1 = arith.constant 0 : i32
    return %c0_i32, %c0_i32_0 : i32, i32
  }
  func.func @transform_17(%arg0: i32) -> (i32, i32) {
    %c0_i32 = arith.constant 0 : i32
    %c0_i32_0 = arith.constant 0 : i32
    %c0_i32_1 = arith.constant 0 : i32
    return %c0_i32, %c0_i32_0 : i32, i32
  }
  func.func @transform_18(%arg0: i32) -> (i32, i32) {
    %c0_i32 = arith.constant 0 : i32
    %c0_i32_0 = arith.constant 0 : i32
    return %arg0, %c0_i32 : i32, i32
  }
  func.func @transform_19(%arg0: i32) -> (i32, i32, i32) {
    %c0_i32 = arith.constant 0 : i32
    %c0_i32_0 = arith.constant 0 : i32
    %c0_i32_1 = arith.constant 0 : i32
    return %c0_i32, %arg0, %c0_i32_0 : i32, i32, i32
  }
}

</mosaic_0001>

<llo_original>
// kernel: cnn_forward.1
$region0: #{cnn_forward.1}
  #allocation0 [shape = 'u32[]', space=smem, size = 0x4, offset = 0x4, fixed_abs, tag = 'smem constant byte address 0x4 - core index']
  #allocation1 [shape = 'u32[144,128]{1,0:T(1,128)}', space=vmem, size = 0x12000, scoped, tag = 'internal scratch']
  %s0 = inlined_call_operand.vmem [shape: bf16[2,32], index: 0, kind: input, shape index: {}]
  %s1 = inlined_call_operand.vmem [shape: bf16[32,8], index: 1, kind: input, shape index: {}]
  %s2 = inlined_call_operand.vmem [shape: bf16[24,16], index: 2, kind: input, shape index: {}]
  %s3 = inlined_call_operand.vmem [shape: bf16[24,16], index: 3, kind: input, shape index: {}]
  %s4 = inlined_call_operand.vmem [shape: f32[1,16], index: 4, kind: input, shape index: {}]
  %s5 = inlined_call_operand.vmem [shape: f32[1,16], index: 5, kind: input, shape index: {}]
  %s6 = inlined_call_operand.vmem [shape: bf16[48,32], index: 6, kind: input, shape index: {}]
  %s7 = inlined_call_operand.vmem [shape: bf16[48,32], index: 7, kind: input, shape index: {}]
  %s8 = inlined_call_operand.vmem [shape: f32[1,32], index: 8, kind: input, shape index: {}]
  %s9 = inlined_call_operand.vmem [shape: f32[1,32], index: 9, kind: input, shape index: {}]
  %s10 = inlined_call_operand.vmem [shape: bf16[96,48], index: 10, kind: input, shape index: {}]
  %s11 = inlined_call_operand.vmem [shape: bf16[96,48], index: 11, kind: input, shape index: {}]
  %s12 = inlined_call_operand.vmem [shape: f32[1,48], index: 12, kind: input, shape index: {}]
  %s13 = inlined_call_operand.vmem [shape: f32[1,48], index: 13, kind: input, shape index: {}]
  %s14 = inlined_call_operand.vmem [shape: bf16[48,128], index: 14, kind: input, shape index: {}]
  %s15 = inlined_call_operand.vmem [shape: bf16[48,128], index: 15, kind: input, shape index: {}]
  %s16 = inlined_call_operand.vmem [shape: f32[1,128], index: 16, kind: input, shape index: {}]
  %s17 = inlined_call_operand.vmem [shape: f32[1,128], index: 17, kind: input, shape index: {}]
  %s18 = inlined_call_operand.vmem [shape: f32[2,128], index: 18, kind: input, shape index: {}]
  %s19 = inlined_call_operand.vmem [shape: f32[3,2,128], index: 19, kind: output, shape index: {}]
  %s20 = sld [smem:[#allocation0]]
  $region86: #{cnn_forward.1} parent=0
    _
  %s22 = ssub.s32 1, %s20
  %s23 = scalar_select 0, %s22, %s20
  // Predicated region
  $region2: #{cnn_forward.1} parent=0 // pred_check
    _
  $region3: #{cnn_forward.1} parent=0 // pred_check_branch
    %25 = sbr.rel (0) target = $region5
  $region4: #{cnn_forward.1} parent=0 // pred_region
    _
  $region5: #{cnn_forward.1} parent=0 // pred_fallthru
    _
  // Predicated region
  $region6: #{cnn_forward.1} parent=0 // pred_check
    _
  $region7: #{cnn_forward.1} parent=0 // pred_check_branch
    %27 = sbr.rel (0) target = $region9
  $region8: #{cnn_forward.1} parent=0 // pred_region
    _
  $region9: #{cnn_forward.1} parent=0 // pred_fallthru
    _
  // Predicated region
  $region10: #{cnn_forward.1} parent=0 // pred_check
    _
  $region11: #{cnn_forward.1} parent=0 // pred_check_branch
    %29 = sbr.rel (0) target = $region13
  $region12: #{cnn_forward.1} parent=0 // pred_region
    _
  $region13: #{cnn_forward.1} parent=0 // pred_fallthru
    _
  // Predicated region
  $region14: #{cnn_forward.1} parent=0 // pred_check
    _
  $region15: #{cnn_forward.1} parent=0 // pred_check_branch
    %31 = sbr.rel (0) target = $region17
  $region16: #{cnn_forward.1} parent=0 // pred_region
    _
  $region17: #{cnn_forward.1} parent=0 // pred_fallthru
    _
  // Predicated region
  $region18: #{cnn_forward.1} parent=0 // pred_check
    _
  $region19: #{cnn_forward.1} parent=0 // pred_check_branch
    %33 = sbr.rel (0) target = $region21
  $region20: #{cnn_forward.1} parent=0 // pred_region
    _
  $region21: #{cnn_forward.1} parent=0 // pred_fallthru
    _
  // Predicated region
  $region22: #{cnn_forward.1} parent=0 // pred_check
    _
  $region23: #{cnn_forward.1} parent=0 // pred_check_branch
    %35 = sbr.rel (0) target = $region25
  $region24: #{cnn_forward.1} parent=0 // pred_region
    _
  $region25: #{cnn_forward.1} parent=0 // pred_fallthru
    _
  // Predicated region
  $region26: #{cnn_forward.1} parent=0 // pred_check
    _
  $region27: #{cnn_forward.1} parent=0 // pred_check_branch
    %37 = sbr.rel (0) target = $region29
  $region28: #{cnn_forward.1} parent=0 // pred_region
    _
  $region29: #{cnn_forward.1} parent=0 // pred_fallthru
    _
  // Predicated region
  $region30: #{cnn_forward.1} parent=0 // pred_check
    _
  $region31: #{cnn_forward.1} parent=0 // pred_check_branch
    %39 = sbr.rel (0) target = $region33
  $region32: #{cnn_forward.1} parent=0 // pred_region
    _
  $region33: #{cnn_forward.1} parent=0 // pred_fallthru
    _
  // Predicated region
  $region34: #{cnn_forward.1} parent=0 // pred_check
    _
  $region35: #{cnn_forward.1} parent=0 // pred_check_branch
    %41 = sbr.rel (0) target = $region37
  $region36: #{cnn_forward.1} parent=0 // pred_region
    _
  $region37: #{cnn_forward.1} parent=0 // pred_fallthru
    _
  // Predicated region
  $region38: #{cnn_forward.1} parent=0 // pred_check
    _
  $region39: #{cnn_forward.1} parent=0 // pred_check_branch
    %43 = sbr.rel (0) target = $region41
  $region40: #{cnn_forward.1} parent=0 // pred_region
    _
  $region41: #{cnn_forward.1} parent=0 // pred_fallthru
    _
  // Predicated region
  $region42: #{cnn_forward.1} parent=0 // pred_check
    _
  $region43: #{cnn_forward.1} parent=0 // pred_check_branch
    %45 = sbr.rel (0) target = $region45
  $region44: #{cnn_forward.1} parent=0 // pred_region
    _
  $region45: #{cnn_forward.1} parent=0 // pred_fallthru
    _
  // Predicated region
  $region46: #{cnn_forward.1} parent=0 // pred_check
    _
  $region47: #{cnn_forward.1} parent=0 // pred_check_branch
    %47 = sbr.rel (0) target = $region49
  $region48: #{cnn_forward.1} parent=0 // pred_region
    _
  $region49: #{cnn_forward.1} parent=0 // pred_fallthru
    _
  // Predicated region
  $region50: #{cnn_forward.1} parent=0 // pred_check
    _
  $region51: #{cnn_forward.1} parent=0 // pred_check_branch
    %49 = sbr.rel (0) target = $region53
  $region52: #{cnn_forward.1} parent=0 // pred_region
    _
  $region53: #{cnn_forward.1} parent=0 // pred_fallthru
    _
  // Predicated region
  $region54: #{cnn_forward.1} parent=0 // pred_check
    _
  $region55: #{cnn_forward.1} parent=0 // pred_check_branch
    %51 = sbr.rel (0) target = $region57
  $region56: #{cnn_forward.1} parent=0 // pred_region
    _
  $region57: #{cnn_forward.1} parent=0 // pred_fallthru
    _
  // Predicated region
  $region58: #{cnn_forward.1} parent=0 // pred_check
    _
  $region59: #{cnn_forward.1} parent=0 // pred_check_branch
    %53 = sbr.rel (0) target = $region61
  $region60: #{cnn_forward.1} parent=0 // pred_region
    _
  $region61: #{cnn_forward.1} parent=0 // pred_fallthru
    _
  // Predicated region
  $region62: #{cnn_forward.1} parent=0 // pred_check
    _
  $region63: #{cnn_forward.1} parent=0 // pred_check_branch
    %55 = sbr.rel (0) target = $region65
  $region64: #{cnn_forward.1} parent=0 // pred_region
    _
  $region65: #{cnn_forward.1} parent=0 // pred_fallthru
    _
  // Predicated region
  $region66: #{cnn_forward.1} parent=0 // pred_check
    _
  $region67: #{cnn_forward.1} parent=0 // pred_check_branch
    %57 = sbr.rel (0) target = $region69
  $region68: #{cnn_forward.1} parent=0 // pred_region
    _
  $region69: #{cnn_forward.1} parent=0 // pred_fallthru
    _
  // Predicated region
  $region70: #{cnn_forward.1} parent=0 // pred_check
    _
  $region71: #{cnn_forward.1} parent=0 // pred_check_branch
    %59 = sbr.rel (0) target = $region73
  $region72: #{cnn_forward.1} parent=0 // pred_region
    _
  $region73: #{cnn_forward.1} parent=0 // pred_fallthru
    _
  // Predicated region
  $region74: #{cnn_forward.1} parent=0 // pred_check
    _
  $region75: #{cnn_forward.1} parent=0 // pred_check_branch
    %61 = sbr.rel (0) target = $region77
  $region76: #{cnn_forward.1} parent=0 // pred_region
    _
  $region77: #{cnn_forward.1} parent=0 // pred_fallthru
    _
  %v63 = vlaneseq
  %v64 = vshrl.u32 %v63, 7
  %v65 = vadd.s32 %v64, 8
  %v66 = vadd.s32 %v64, 16
  %v67 = vadd.s32 %v64, 24
  %vm68 = vcmp.lt.s32.totalorder %v64, 0
  %v69 = vsub.s32 0, %v64
  %v70 = vsel %vm68, %v69, %v64
  %v71 = vshrl.u32 %v70, 4
  %v72 = vand.u32 %v70, 15
  %v73 = vsub.s32 0, %v72
  %v74 = vsel %vm68, %v73, %v72
  %vm75 = vcmp.lt.s32.totalorder %v65, 0
  %v76 = vsub.s32 0, %v65
  %v77 = vsel %vm75, %v76, %v65
  %v78 = vshrl.u32 %v77, 4
  %v79 = vand.u32 %v77, 15
  %v80 = vsub.s32 0, %v79
  %v81 = vsel %vm75, %v80, %v79
  %vm82 = vcmp.lt.s32.totalorder %v66, 0
  %v83 = vsub.s32 0, %v66
  %v84 = vsel %vm82, %v83, %v66
  %v85 = vshrl.u32 %v84, 4
  %v86 = vand.u32 %v84, 15
  %v87 = vsub.s32 0, %v86
  %v88 = vsel %vm82, %v87, %v86
  %vm89 = vcmp.lt.s32.totalorder %v67, 0
  %v90 = vsub.s32 0, %v67
  %v91 = vsel %vm89, %v90, %v67
  %v92 = vshrl.u32 %v91, 4
  %v93 = vand.u32 %v91, 15
  %v94 = vsub.s32 0, %v93
  %v95 = vsel %vm89, %v94, %v93
  %vm96 = vcmp.ne.s32.totalorder %v74, 0
  %vm97 = vcmp.ne.s32.totalorder %v81, 0
  %vm98 = vcmp.ne.s32.totalorder %v88, 0
  %vm99 = vcmp.ne.s32.totalorder %v95, 0
  %vm100 = vcmp.lt.s32.totalorder %v74, 0
  %vm101 = vcmp.lt.s32.totalorder %v81, 0
  %vm102 = vcmp.lt.s32.totalorder %v88, 0
  %vm103 = vcmp.lt.s32.totalorder %v95, 0
  %vm104 = vmand %vm100, %vm96
  %vm105 = vmand %vm101, %vm97
  %vm106 = vmand %vm102, %vm98
  %vm107 = vmand %vm103, %vm99
  %v108 = vadd.s32 %v74, 16
  %v109 = vadd.s32 %v81, 16
  %v110 = vadd.s32 %v88, 16
  %v111 = vadd.s32 %v95, 16
  %v112 = vsel %vm104, %v108, %v74
  %v113 = vsel %vm105, %v109, %v81
  %v114 = vsel %vm106, %v110, %v88
  %v115 = vsel %vm107, %v111, %v95
  %v116 = vadd.s32 %v112, 4294967295
  %v117 = vadd.s32 %v113, 4294967295
  %v118 = vadd.s32 %v114, 4294967295
  %v119 = vadd.s32 %v115, 4294967295
  %vm120 = vcmp.ge.s32.totalorder %v116, 0
  %vm121 = vcmp.ge.s32.totalorder %v117, 0
  %vm122 = vcmp.ge.s32.totalorder %v118, 0
  %vm123 = vcmp.ge.s32.totalorder %v119, 0
  %vm124 = vcmp.lt.s32.totalorder %v116, 16
  %vm125 = vcmp.lt.s32.totalorder %v117, 16
  %vm126 = vcmp.lt.s32.totalorder %v118, 16
  %vm127 = vcmp.lt.s32.totalorder %v119, 16
  %vm128 = vmand %vm120, %vm124
  %vm129 = vmand %vm121, %vm125
  %vm130 = vmand %vm122, %vm126
  %vm131 = vmand %vm123, %vm127
  %v132 = vsel %vm128, 1.0, 0.0
  %v133 = vsel %vm129, 1.0, 0.0
  %v134 = vsel %vm130, 1.0, 0.0
  %v135 = vsel %vm131, 1.0, 0.0
  %v136 = vadd.s32 %v112, 1
  %v137 = vadd.s32 %v113, 1
  %v138 = vadd.s32 %v114, 1
  %v139 = vadd.s32 %v115, 1
  %vm140 = vcmp.ge.s32.totalorder %v136, 0
  %vm141 = vcmp.ge.s32.totalorder %v137, 0
  %vm142 = vcmp.ge.s32.totalorder %v138, 0
  %vm143 = vcmp.ge.s32.totalorder %v139, 0
  %vm144 = vcmp.lt.s32.totalorder %v136, 16
  %vm145 = vcmp.lt.s32.totalorder %v137, 16
  %vm146 = vcmp.lt.s32.totalorder %v138, 16
  %vm147 = vcmp.lt.s32.totalorder %v139, 16
  %vm148 = vmand %vm140, %vm144
  %vm149 = vmand %vm141, %vm145
  %vm150 = vmand %vm142, %vm146
  %vm151 = vmand %vm143, %vm147
  %v152 = vsel %vm148, 1.0, 0.0
  %v153 = vsel %vm149, 1.0, 0.0
  %v154 = vsel %vm150, 1.0, 0.0
  %v155 = vsel %vm151, 1.0, 0.0
  %v156 = vld [vmem:[%s1] sm:$0xf]
  %v157 = vld [vmem:[%s1 + $0x4] sm:$0xf]
  %v158 = vld [vmem:[%s1 + $0x8] sm:$0xf]
  %v159 = vld [vmem:[%s1 + $0xc] sm:$0xf]
  %v160 = vunpack.c.l.bf16 %v156
  %v161 = vunpack.c.l.bf16 %v157
  %v162 = vunpack.c.l.bf16 %v158
  %v163 = vunpack.c.l.bf16 %v159
  %v164 = vrot.slane %v160, 7
  %v165 = vrot.slane %v161, 7
  %v166 = vrot.slane %v162, 7
  %v167 = vrot.slane %v163, 7
  %vm168 = vcmp.lt.s32.totalorder %v64, 1
  %v169 = vsel %vm168, %v166, %v167
  %v170 = vsel %vm168, %v165, %v166
  %v171 = vsel %vm168, %v164, %v165
  %v172 = vsel %vm168, %v167, %v164
  %v173 = vmul.f32 %v172, %v132
  %v174 = vmul.f32 %v171, %v133
  %v175 = vmul.f32 %v170, %v134
  %v176 = vmul.f32 %v169, %v135
  %v177 = vrot.slane %v160, 1
  %v178 = vrot.slane %v161, 1
  %v179 = vrot.slane %v162, 1
  %v180 = vrot.slane %v163, 1
  %vm181 = vcmp.lt.s32.totalorder %v64, 7
  %v182 = vsel %vm181, %v179, %v180
  %v183 = vsel %vm181, %v178, %v179
  %v184 = vsel %vm181, %v177, %v178
  %v185 = vsel %vm181, %v180, %v177
  %v186 = vmul.f32 %v184, %v152
  %v187 = vmul.f32 %v183, %v153
  %v188 = vmul.f32 %v182, %v154
  %v189 = vmul.f32 %v185, %v155
  %194 = vrot.lane.b32.xlu0 %v160, 8
  %v195 = vpop.permute.xlu0 %194
  %196 = vrot.lane.b32.xlu0 %v161, 8
  %v197 = vpop.permute.xlu0 %196
  %198 = vrot.lane.b32.xlu0 %v162, 8
  %v199 = vpop.permute.xlu0 %198
  %200 = vrot.lane.b32.xlu0 %v163, 8
  %v201 = vpop.permute.xlu0 %200
  %210 = vrot.lane.b32.xlu0 %v186, 16
  %v211 = vpop.permute.xlu0 %210
  %212 = vrot.lane.b32.xlu0 %v187, 16
  %v213 = vpop.permute.xlu0 %212
  %214 = vrot.lane.b32.xlu0 %v188, 16
  %v215 = vpop.permute.xlu0 %214
  %216 = vrot.lane.b32.xlu0 %v189, 16
  %v217 = vpop.permute.xlu0 %216
  %vm222 = vcmask 64512
  %v223 = vsel %vm222, %v173, %v195
  %v224 = vsel %vm222, %v174, %v197
  %v225 = vsel %vm222, %v175, %v199
  %v226 = vsel %vm222, %v176, %v201
  %vm227 = vcmask 130048
  %v228 = vsel %vm227, %v223, %v211
  %v229 = vsel %vm227, %v224, %v213
  %v230 = vsel %vm227, %v225, %v215
  %v231 = vsel %vm227, %v226, %v217
  %v232 = vpack.c.bf16 %v229, %v228
  %v233 = vpack.c.bf16 %v231, %v230
  %v234 = vld [vmem:[%s2] sm:$0xf]
  %v235 = vld [vmem:[%s2 + $0x4] sm:$0xf]
  %v236 = vld [vmem:[%s2 + $0x8] sm:$0xf]
  %v237 = vld [vmem:[%s4] sm:$0x1]
  %v239 = vlaneseq
  %v240 = vshrl.u32 %v239, 7
  %v241 = vsub.s32 0, %v240
  %v242 = vrot.slane %v237, %v241
  %v247 = vunpack.c.l.b16 %v234
  %v248 = vunpack.c.l.b16 %v235
  %v249 = vunpack.c.l.b16 %v236
  %v250 = vpack.c.b16 %v248, %v247
  %v251 = vpack.c.b16 %v249, %v249
  %vm253 = vcmask 195584
  %v255 = vsel %vm253, %v232, 0
  %v258 = vsel %vm253, %v233, 0
  %vm260 = vcmask 1043456
  %v262 = vsel %vm260, %v251, 0
  %264 = vmatprep.subr.bf16.mxu0 0
  %265 = vmatpush1.bf16.msra.mxu0 0
  %266 = vmatprep.subr.bf16.mxu0 0
  %267 = vmatpush1.bf16.msra.mxu0 0
  %268 = vmatprep.subr.bf16.mxu0 0
  %269 = vmatpush1.bf16.msra.mxu0 0
  %270 = vmatprep.subr.bf16.mxu0 0
  %271 = vmatpush1.bf16.msra.mxu0 0
  %272 = vmatprep.subr.bf16.mxu0 0
  %273 = vmatpush1.bf16.msra.mxu0 0
  %274 = vmatprep.subr.bf16.mxu0 0
  %275 = vmatpush1.bf16.msra.mxu0 0
  %276 = vmatprep.subr.bf16.mxu0 0
  %277 = vmatpush1.bf16.msra.mxu0 %v262
  %278 = vmatprep.subr.bf16.mxu0 0
  %279 = vmatpush1.bf16.msra.mxu0 %v250
  %280 = vmatprep.subr.bf16.mxu0 0
  %281 = vmatpush2.bf16.msra.mxu0 0
  %282 = vmatprep.subr.bf16.mxu0 0
  %283 = vmatpush2.bf16.msra.mxu0 0
  %284 = vmatprep.subr.bf16.mxu0 0
  %285 = vmatpush2.bf16.msra.mxu0 0
  %286 = vmatprep.subr.bf16.mxu0 0
  %287 = vmatpush2.bf16.msra.mxu0 0
  %288 = vmatprep.subr.bf16.mxu0 0
  %289 = vmatpush2.bf16.msra.mxu0 0
  %290 = vmatprep.subr.bf16.mxu0 0
  %291 = vmatpush2.bf16.msra.mxu0 0
  %292 = vmatprep.subr.bf16.mxu0 0
  %293 = vmatpush2.bf16.msra.mxu0 0
  %294 = vmatprep.subr.bf16.mxu0 0
  %295 = vmatpush2.bf16.msra.mxu0 0
  %296 = vmatprep.mubr.bf16.mxu0 0
  %297 = vmatmul.mubr.bf16.gmra.mxu0 %v255
  %v298 = vpop.f32.mrf.mxu0
  %v299 = vadd.f32 %v242, %v298
  %v300 = vpop.f32.mrf.mxu0
  %v301 = vpop.f32.mrf.mxu0
  %v302 = vadd.f32 %v242, %v301
  %v303 = vpop.f32.mrf.mxu0
  %304 = vmatprep.mubr.bf16.mxu0 0
  %305 = vmatmul.mubr.bf16.gmra.mxu0 %v258
  %v306 = vpop.f32.mrf.mxu0
  %v307 = vadd.f32 %v242, %v306
  %v308 = vpop.f32.mrf.mxu0
  %v309 = vpop.f32.mrf.mxu0
  %v310 = vadd.f32 %v242, %v309
  %v311 = vpop.f32.mrf.mxu0
  %312 = vdwg.mxu0
  %v313 = vld [vmem:[%s3] sm:$0xf]
  %v314 = vld [vmem:[%s3 + $0x4] sm:$0xf]
  %v315 = vld [vmem:[%s3 + $0x8] sm:$0xf]
  %v316 = vld [vmem:[%s5] sm:$0x1]
  %v318 = vlaneseq
  %v319 = vshrl.u32 %v318, 7
  %v320 = vsub.s32 0, %v319
  %v321 = vrot.slane %v316, %v320
  %v326 = vunpack.c.l.b16 %v313
  %v327 = vunpack.c.l.b16 %v314
  %v328 = vunpack.c.l.b16 %v315
  %v329 = vpack.c.b16 %v327, %v326
  %v330 = vpack.c.b16 %v328, %v328
  %v333 = vsel %vm260, %v330, 0
  %335 = vmatprep.subr.bf16.mxu0 0
  %336 = vmatpush1.bf16.msra.mxu0 0
  %337 = vmatprep.subr.bf16.mxu0 0
  %338 = vmatpush1.bf16.msra.mxu0 0
  %339 = vmatprep.subr.bf16.mxu0 0
  %340 = vmatpush1.bf16.msra.mxu0 0
  %341 = vmatprep.subr.bf16.mxu0 0
  %342 = vmatpush1.bf16.msra.mxu0 0
  %343 = vmatprep.subr.bf16.mxu0 0
  %344 = vmatpush1.bf16.msra.mxu0 0
  %345 = vmatprep.subr.bf16.mxu0 0
  %346 = vmatpush1.bf16.msra.mxu0 0
  %347 = vmatprep.subr.bf16.mxu0 0
  %348 = vmatpush1.bf16.msra.mxu0 %v333
  %349 = vmatprep.subr.bf16.mxu0 0
  %350 = vmatpush1.bf16.msra.mxu0 %v329
  %351 = vmatprep.subr.bf16.mxu0 0
  %352 = vmatpush2.bf16.msra.mxu0 0
  %353 = vmatprep.subr.bf16.mxu0 0
  %354 = vmatpush2.bf16.msra.mxu0 0
  %355 = vmatprep.subr.bf16.mxu0 0
  %356 = vmatpush2.bf16.msra.mxu0 0
  %357 = vmatprep.subr.bf16.mxu0 0
  %358 = vmatpush2.bf16.msra.mxu0 0
  %359 = vmatprep.subr.bf16.mxu0 0
  %360 = vmatpush2.bf16.msra.mxu0 0
  %361 = vmatprep.subr.bf16.mxu0 0
  %362 = vmatpush2.bf16.msra.mxu0 0
  %363 = vmatprep.subr.bf16.mxu0 0
  %364 = vmatpush2.bf16.msra.mxu0 0
  %365 = vmatprep.subr.bf16.mxu0 0
  %366 = vmatpush2.bf16.msra.mxu0 0
  %367 = vmatprep.mubr.bf16.mxu0 0
  %368 = vmatmul.mubr.bf16.gmra.mxu0 %v255
  %v369 = vpop.f32.mrf.mxu0
  %v370 = vadd.f32 %v321, %v369
  %v371 = vpop.f32.mrf.mxu0
  %v372 = vpop.f32.mrf.mxu0
  %v373 = vadd.f32 %v321, %v372
  %v374 = vpop.f32.mrf.mxu0
  %375 = vmatprep.mubr.bf16.mxu0 0
  %376 = vmatmul.mubr.bf16.gmra.mxu0 %v258
  %v377 = vpop.f32.mrf.mxu0
  %v378 = vadd.f32 %v321, %v377
  %v379 = vpop.f32.mrf.mxu0
  %v380 = vpop.f32.mrf.mxu0
  %v381 = vadd.f32 %v321, %v380
  %v382 = vpop.f32.mrf.mxu0
  %383 = vdwg.mxu0
  %v384 = vxor.u32 %v370, 2147483648
  %v385 = vxor.u32 %v373, 2147483648
  %v386 = vxor.u32 %v378, 2147483648
  %v387 = vxor.u32 %v381, 2147483648
  %v388 = vmul.f32 %v384, 1.442695
  %v389 = vpow.pop %v388
  %v390 = vmul.f32 %v385, 1.442695
  %v391 = vpow.pop %v390
  %v392 = vmul.f32 %v386, 1.442695
  %v393 = vpow.pop %v392
  %v394 = vmul.f32 %v387, 1.442695
  %v395 = vpow.pop %v394
  %v396 = vadd.f32 %v389, 1.0
  %v397 = vadd.f32 %v391, 1.0
  %v398 = vadd.f32 %v393, 1.0
  %v399 = vadd.f32 %v395, 1.0
  %v400 = vrcp.pop %v396
  %v401 = vmul.f32 1.0, %v400
  %v402 = vrcp.pop %v397
  %v403 = vmul.f32 1.0, %v402
  %v404 = vrcp.pop %v398
  %v405 = vmul.f32 1.0, %v404
  %v406 = vrcp.pop %v399
  %v407 = vmul.f32 1.0, %v406
  %v408 = vmul.f32 %v299, %v401
  %v409 = vmul.f32 %v302, %v403
  %v410 = vmul.f32 %v307, %v405
  %v411 = vmul.f32 %v310, %v407
  %v412 = vrot.slane %v408, 7
  %v413 = vrot.slane %v409, 7
  %v414 = vrot.slane %v410, 7
  %v415 = vrot.slane %v411, 7
  %v416 = vsel %vm168, %v414, %v415
  %v417 = vsel %vm168, %v413, %v414
  %v418 = vsel %vm168, %v412, %v413
  %v419 = vsel %vm168, %v415, %v412
  %v420 = vmul.f32 %v419, %v132
  %v421 = vmul.f32 %v418, %v133
  %v422 = vmul.f32 %v417, %v134
  %v423 = vmul.f32 %v416, %v135
  %v424 = vrot.slane %v408, 1
  %v425 = vrot.slane %v409, 1
  %v426 = vrot.slane %v410, 1
  %v427 = vrot.slane %v411, 1
  %v428 = vsel %vm181, %v426, %v427
  %v429 = vsel %vm181, %v425, %v426
  %v430 = vsel %vm181, %v424, %v425
  %v431 = vsel %vm181, %v427, %v424
  %v432 = vmul.f32 %v430, %v152
  %v433 = vmul.f32 %v429, %v153
  %v434 = vmul.f32 %v428, %v154
  %v435 = vmul.f32 %v431, %v155
  %440 = vrot.lane.b32.xlu0 %v408, 16
  %v441 = vpop.permute.xlu0 %440
  %442 = vrot.lane.b32.xlu0 %v409, 16
  %v443 = vpop.permute.xlu0 %442
  %444 = vrot.lane.b32.xlu0 %v410, 16
  %v445 = vpop.permute.xlu0 %444
  %446 = vrot.lane.b32.xlu0 %v411, 16
  %v447 = vpop.permute.xlu0 %446
  %456 = vrot.lane.b32.xlu0 %v432, 32
  %v457 = vpop.permute.xlu0 %456
  %458 = vrot.lane.b32.xlu0 %v433, 32
  %v459 = vpop.permute.xlu0 %458
  %460 = vrot.lane.b32.xlu0 %v434, 32
  %v461 = vpop.permute.xlu0 %460
  %462 = vrot.lane.b32.xlu0 %v435, 32
  %v463 = vpop.permute.xlu0 %462
  %v468 = vsel %vm227, %v420, %v441
  %v469 = vsel %vm227, %v421, %v443
  %v470 = vsel %vm227, %v422, %v445
  %v471 = vsel %vm227, %v423, %v447
  %vm472 = vcmask 261120
  %v473 = vsel %vm472, %v468, %v457
  %v474 = vsel %vm472, %v469, %v459
  %v475 = vsel %vm472, %v470, %v461
  %v476 = vsel %vm472, %v471, %v463
  %v477 = vpack.c.bf16 %v474, %v473
  %v478 = vpack.c.bf16 %v476, %v475
  %v479 = vld [vmem:[%s6] sm:$0xf]
  %v480 = vld [vmem:[%s6 + $0x4] sm:$0xf]
  %v481 = vld [vmem:[%s6 + $0x8] sm:$0xf]
  %v482 = vld [vmem:[%s6 + $0xc] sm:$0xf]
  %v483 = vld [vmem:[%s6 + $0x10] sm:$0xf]
  %v484 = vld [vmem:[%s6 + $0x14] sm:$0xf]
  %v485 = vld [vmem:[%s8] sm:$0x1]
  %v487 = vlaneseq
  %v488 = vshrl.u32 %v487, 7
  %v489 = vsub.s32 0, %v488
  %v490 = vrot.slane %v485, %v489
  %v498 = vunpack.c.l.b16 %v479
  %v499 = vunpack.c.l.b16 %v480
  %v500 = vunpack.c.l.b16 %v481
  %v501 = vunpack.c.l.b16 %v482
  %v502 = vunpack.c.l.b16 %v483
  %v503 = vunpack.c.l.b16 %v484
  %v504 = vpack.c.b16 %v499, %v498
  %v505 = vpack.c.b16 %v501, %v500
  %v506 = vpack.c.b16 %v503, %v502
  %vm510 = vcmask 392192
  %v512 = vsel %vm510, %v477, 0
  %v515 = vsel %vm510, %v478, 0
  %517 = vmatprep.subr.bf16.mxu0 0
  %518 = vmatpush1.bf16.msra.mxu0 0
  %519 = vmatprep.subr.bf16.mxu0 0
  %520 = vmatpush1.bf16.msra.mxu0 0
  %521 = vmatprep.subr.bf16.mxu0 0
  %522 = vmatpush1.bf16.msra.mxu0 0
  %523 = vmatprep.subr.bf16.mxu0 0
  %524 = vmatpush1.bf16.msra.mxu0 0
  %525 = vmatprep.subr.bf16.mxu0 0
  %526 = vmatpush1.bf16.msra.mxu0 0
  %527 = vmatprep.subr.bf16.mxu0 0
  %528 = vmatpush1.bf16.msra.mxu0 %v506
  %529 = vmatprep.subr.bf16.mxu0 0
  %530 = vmatpush1.bf16.msra.mxu0 %v505
  %531 = vmatprep.subr.bf16.mxu0 0
  %532 = vmatpush1.bf16.msra.mxu0 %v504
  %533 = vmatprep.subr.bf16.mxu0 0
  %534 = vmatpush2.bf16.msra.mxu0 0
  %535 = vmatprep.subr.bf16.mxu0 0
  %536 = vmatpush2.bf16.msra.mxu0 0
  %537 = vmatprep.subr.bf16.mxu0 0
  %538 = vmatpush2.bf16.msra.mxu0 0
  %539 = vmatprep.subr.bf16.mxu0 0
  %540 = vmatpush2.bf16.msra.mxu0 0
  %541 = vmatprep.subr.bf16.mxu0 0
  %542 = vmatpush2.bf16.msra.mxu0 0
  %543 = vmatprep.subr.bf16.mxu0 0
  %544 = vmatpush2.bf16.msra.mxu0 0
  %545 = vmatprep.subr.bf16.mxu0 0
  %546 = vmatpush2.bf16.msra.mxu0 0
  %547 = vmatprep.subr.bf16.mxu0 0
  %548 = vmatpush2.bf16.msra.mxu0 0
  %549 = vmatprep.mubr.bf16.mxu0 0
  %550 = vmatmul.mubr.bf16.gmra.mxu0 %v512
  %v551 = vpop.f32.mrf.mxu0
  %v552 = vadd.f32 %v490, %v551
  %v553 = vpop.f32.mrf.mxu0
  %v554 = vpop.f32.mrf.mxu0
  %v555 = vadd.f32 %v490, %v554
  %v556 = vpop.f32.mrf.mxu0
  %557 = vmatprep.mubr.bf16.mxu0 0
  %558 = vmatmul.mubr.bf16.gmra.mxu0 %v515
  %v559 = vpop.f32.mrf.mxu0
  %v560 = vadd.f32 %v490, %v559
  %v561 = vpop.f32.mrf.mxu0
  %v562 = vpop.f32.mrf.mxu0
  %v563 = vadd.f32 %v490, %v562
  %v564 = vpop.f32.mrf.mxu0
  %565 = vdwg.mxu0
  %v566 = vld [vmem:[%s7] sm:$0xf]
  %v567 = vld [vmem:[%s7 + $0x4] sm:$0xf]
  %v568 = vld [vmem:[%s7 + $0x8] sm:$0xf]
  %v569 = vld [vmem:[%s7 + $0xc] sm:$0xf]
  %v570 = vld [vmem:[%s7 + $0x10] sm:$0xf]
  %v571 = vld [vmem:[%s7 + $0x14] sm:$0xf]
  %v572 = vld [vmem:[%s9] sm:$0x1]
  %v574 = vlaneseq
  %v575 = vshrl.u32 %v574, 7
  %v576 = vsub.s32 0, %v575
  %v577 = vrot.slane %v572, %v576
  %v585 = vunpack.c.l.b16 %v566
  %v586 = vunpack.c.l.b16 %v567
  %v587 = vunpack.c.l.b16 %v568
  %v588 = vunpack.c.l.b16 %v569
  %v589 = vunpack.c.l.b16 %v570
  %v590 = vunpack.c.l.b16 %v571
  %v591 = vpack.c.b16 %v586, %v585
  %v592 = vpack.c.b16 %v588, %v587
  %v593 = vpack.c.b16 %v590, %v589
  %597 = vmatprep.subr.bf16.mxu0 0
  %598 = vmatpush1.bf16.msra.mxu0 0
  %599 = vmatprep.subr.bf16.mxu0 0
  %600 = vmatpush1.bf16.msra.mxu0 0
  %601 = vmatprep.subr.bf16.mxu0 0
  %602 = vmatpush1.bf16.msra.mxu0 0
  %603 = vmatprep.subr.bf16.mxu0 0
  %604 = vmatpush1.bf16.msra.mxu0 0
  %605 = vmatprep.subr.bf16.mxu0 0
  %606 = vmatpush1.bf16.msra.mxu0 0
  %607 = vmatprep.subr.bf16.mxu0 0
  %608 = vmatpush1.bf16.msra.mxu0 %v593
  %609 = vmatprep.subr.bf16.mxu0 0
  %610 = vmatpush1.bf16.msra.mxu0 %v592
  %611 = vmatprep.subr.bf16.mxu0 0
  %612 = vmatpush1.bf16.msra.mxu0 %v591
  %613 = vmatprep.subr.bf16.mxu0 0
  %614 = vmatpush2.bf16.msra.mxu0 0
  %615 = vmatprep.subr.bf16.mxu0 0
  %616 = vmatpush2.bf16.msra.mxu0 0
  %617 = vmatprep.subr.bf16.mxu0 0
  %618 = vmatpush2.bf16.msra.mxu0 0
  %619 = vmatprep.subr.bf16.mxu0 0
  %620 = vmatpush2.bf16.msra.mxu0 0
  %621 = vmatprep.subr.bf16.mxu0 0
  %622 = vmatpush2.bf16.msra.mxu0 0
  %623 = vmatprep.subr.bf16.mxu0 0
  %624 = vmatpush2.bf16.msra.mxu0 0
  %625 = vmatprep.subr.bf16.mxu0 0
  %626 = vmatpush2.bf16.msra.mxu0 0
  %627 = vmatprep.subr.bf16.mxu0 0
  %628 = vmatpush2.bf16.msra.mxu0 0
  %629 = vmatprep.mubr.bf16.mxu0 0
  %630 = vmatmul.mubr.bf16.gmra.mxu0 %v512
  %v631 = vpop.f32.mrf.mxu0
  %v632 = vadd.f32 %v577, %v631
  %v633 = vpop.f32.mrf.mxu0
  %v634 = vpop.f32.mrf.mxu0
  %v635 = vadd.f32 %v577, %v634
  %v636 = vpop.f32.mrf.mxu0
  %637 = vmatprep.mubr.bf16.mxu0 0
  %638 = vmatmul.mubr.bf16.gmra.mxu0 %v515
  %v639 = vpop.f32.mrf.mxu0
  %v640 = vadd.f32 %v577, %v639
  %v641 = vpop.f32.mrf.mxu0
  %v642 = vpop.f32.mrf.mxu0
  %v643 = vadd.f32 %v577, %v642
  %v644 = vpop.f32.mrf.mxu0
  %645 = vdwg.mxu0
  %v646 = vxor.u32 %v632, 2147483648
  %v647 = vxor.u32 %v635, 2147483648
  %v648 = vxor.u32 %v640, 2147483648
  %v649 = vxor.u32 %v643, 2147483648
  %v650 = vmul.f32 %v646, 1.442695
  %v651 = vpow.pop %v650
  %v652 = vmul.f32 %v647, 1.442695
  %v653 = vpow.pop %v652
  %v654 = vmul.f32 %v648, 1.442695
  %v655 = vpow.pop %v654
  %v656 = vmul.f32 %v649, 1.442695
  %v657 = vpow.pop %v656
  %v658 = vadd.f32 %v651, 1.0
  %v659 = vadd.f32 %v653, 1.0
  %v660 = vadd.f32 %v655, 1.0
  %v661 = vadd.f32 %v657, 1.0
  %v662 = vrcp.pop %v658
  %v663 = vmul.f32 1.0, %v662
  %v664 = vrcp.pop %v659
  %v665 = vmul.f32 1.0, %v664
  %v666 = vrcp.pop %v660
  %v667 = vmul.f32 1.0, %v666
  %v668 = vrcp.pop %v661
  %v669 = vmul.f32 1.0, %v668
  %v670 = vmul.f32 %v552, %v663
  %v671 = vmul.f32 %v555, %v665
  %v672 = vmul.f32 %v560, %v667
  %v673 = vmul.f32 %v563, %v669
  %v674 = vrot.slane %v670, 7
  %v675 = vrot.slane %v671, 7
  %v676 = vrot.slane %v672, 7
  %v677 = vrot.slane %v673, 7
  %v678 = vsel %vm168, %v676, %v677
  %v679 = vsel %vm168, %v675, %v676
  %v680 = vsel %vm168, %v674, %v675
  %v681 = vsel %vm168, %v677, %v674
  %v682 = vmul.f32 %v681, %v132
  %v683 = vmul.f32 %v680, %v133
  %v684 = vmul.f32 %v679, %v134
  %v685 = vmul.f32 %v678, %v135
  %v686 = vrot.slane %v670, 1
  %v687 = vrot.slane %v671, 1
  %v688 = vrot.slane %v672, 1
  %v689 = vrot.slane %v673, 1
  %v690 = vsel %vm181, %v688, %v689
  %v691 = vsel %vm181, %v687, %v688
  %v692 = vsel %vm181, %v686, %v687
  %v693 = vsel %vm181, %v689, %v686
  %v694 = vmul.f32 %v692, %v152
  %v695 = vmul.f32 %v691, %v153
  %v696 = vmul.f32 %v690, %v154
  %v697 = vmul.f32 %v693, %v155
  %702 = vrot.lane.b32.xlu0 %v670, 32
  %v703 = vpop.permute.xlu0 %702
  %704 = vrot.lane.b32.xlu0 %v671, 32
  %v705 = vpop.permute.xlu0 %704
  %706 = vrot.lane.b32.xlu0 %v672, 32
  %v707 = vpop.permute.xlu0 %706
  %708 = vrot.lane.b32.xlu0 %v673, 32
  %v709 = vpop.permute.xlu0 %708
  %718 = vrot.lane.b32.xlu0 %v694, 64
  %v719 = vpop.permute.xlu0 %718
  %720 = vrot.lane.b32.xlu0 %v695, 64
  %v721 = vpop.permute.xlu0 %720
  %722 = vrot.lane.b32.xlu0 %v696, 64
  %v723 = vpop.permute.xlu0 %722
  %724 = vrot.lane.b32.xlu0 %v697, 64
  %v725 = vpop.permute.xlu0 %724
  %v730 = vsel %vm472, %v682, %v703
  %v731 = vsel %vm472, %v683, %v705
  %v732 = vsel %vm472, %v684, %v707
  %v733 = vsel %vm472, %v685, %v709
  %vm734 = vcmask 523264
  %v735 = vsel %vm734, %v730, %v719
  %v736 = vsel %vm734, %v731, %v721
  %v737 = vsel %vm734, %v732, %v723
  %v738 = vsel %vm734, %v733, %v725
  %v739 = vpack.c.bf16 %v736, %v735
  %v740 = vpack.c.bf16 %v738, %v737
  %v741 = vld [vmem:[%s10] sm:$0xf]
  %v742 = vld [vmem:[%s10 + $0x4] sm:$0xf]
  %v743 = vld [vmem:[%s10 + $0x8] sm:$0xf]
  %v744 = vld [vmem:[%s10 + $0xc] sm:$0xf]
  %v745 = vld [vmem:[%s10 + $0x10] sm:$0xf]
  %v746 = vld [vmem:[%s10 + $0x14] sm:$0xf]
  %v747 = vld [vmem:[%s10 + $0x18] sm:$0xf]
  %v748 = vld [vmem:[%s10 + $0x1c] sm:$0xf]
  %v749 = vld [vmem:[%s10 + $0x20] sm:$0xf]
  %v750 = vld [vmem:[%s10 + $0x24] sm:$0xf]
  %v751 = vld [vmem:[%s10 + $0x28] sm:$0xf]
  %v752 = vld [vmem:[%s10 + $0x2c] sm:$0xf]
  %v753 = vld [vmem:[%s12] sm:$0x1]
  %v755 = vlaneseq
  %v756 = vshrl.u32 %v755, 7
  %v757 = vsub.s32 0, %v756
  %v758 = vrot.slane %v753, %v757
  %v772 = vunpack.c.l.b16 %v741
  %v773 = vunpack.c.l.b16 %v742
  %v774 = vunpack.c.l.b16 %v743
  %v775 = vunpack.c.l.b16 %v744
  %v776 = vunpack.c.l.b16 %v745
  %v777 = vunpack.c.l.b16 %v746
  %v778 = vunpack.c.l.b16 %v747
  %v779 = vunpack.c.l.b16 %v748
  %v780 = vunpack.c.l.b16 %v749
  %v781 = vunpack.c.l.b16 %v750
  %v782 = vunpack.c.l.b16 %v751
  %v783 = vunpack.c.l.b16 %v752
  %v784 = vpack.c.b16 %v773, %v772
  %v785 = vpack.c.b16 %v775, %v774
  %v786 = vpack.c.b16 %v777, %v776
  %v787 = vpack.c.b16 %v779, %v778
  %v788 = vpack.c.b16 %v781, %v780
  %v789 = vpack.c.b16 %v783, %v782
  %vm796 = vcmask 785408
  %v798 = vsel %vm796, %v739, 0
  %v801 = vsel %vm796, %v740, 0
  %803 = vmatprep.subr.bf16.mxu0 0
  %804 = vmatpush1.bf16.msra.mxu0 0
  %805 = vmatprep.subr.bf16.mxu0 0
  %806 = vmatpush1.bf16.msra.mxu0 0
  %807 = vmatprep.subr.bf16.mxu0 0
  %808 = vmatpush1.bf16.msra.mxu0 %v789
  %809 = vmatprep.subr.bf16.mxu0 0
  %810 = vmatpush1.bf16.msra.mxu0 %v788
  %811 = vmatprep.subr.bf16.mxu0 0
  %812 = vmatpush1.bf16.msra.mxu0 %v787
  %813 = vmatprep.subr.bf16.mxu0 0
  %814 = vmatpush1.bf16.msra.mxu0 %v786
  %815 = vmatprep.subr.bf16.mxu0 0
  %816 = vmatpush1.bf16.msra.mxu0 %v785
  %817 = vmatprep.subr.bf16.mxu0 0
  %818 = vmatpush1.bf16.msra.mxu0 %v784
  %819 = vmatprep.subr.bf16.mxu0 0
  %820 = vmatpush2.bf16.msra.mxu0 0
  %821 = vmatprep.subr.bf16.mxu0 0
  %822 = vmatpush2.bf16.msra.mxu0 0
  %823 = vmatprep.subr.bf16.mxu0 0
  %824 = vmatpush2.bf16.msra.mxu0 0
  %825 = vmatprep.subr.bf16.mxu0 0
  %826 = vmatpush2.bf16.msra.mxu0 0
  %827 = vmatprep.subr.bf16.mxu0 0
  %828 = vmatpush2.bf16.msra.mxu0 0
  %829 = vmatprep.subr.bf16.mxu0 0
  %830 = vmatpush2.bf16.msra.mxu0 0
  %831 = vmatprep.subr.bf16.mxu0 0
  %832 = vmatpush2.bf16.msra.mxu0 0
  %833 = vmatprep.subr.bf16.mxu0 0
  %834 = vmatpush2.bf16.msra.mxu0 0
  %835 = vmatprep.mubr.bf16.mxu0 0
  %836 = vmatmul.mubr.bf16.gmra.mxu0 %v798
  %v837 = vpop.f32.mrf.mxu0
  %v838 = vadd.f32 %v758, %v837
  %v839 = vpop.f32.mrf.mxu0
  %v840 = vpop.f32.mrf.mxu0
  %v841 = vadd.f32 %v758, %v840
  %v842 = vpop.f32.mrf.mxu0
  %843 = vmatprep.mubr.bf16.mxu0 0
  %844 = vmatmul.mubr.bf16.gmra.mxu0 %v801
  %v845 = vpop.f32.mrf.mxu0
  %v846 = vadd.f32 %v758, %v845
  %v847 = vpop.f32.mrf.mxu0
  %v848 = vpop.f32.mrf.mxu0
  %v849 = vadd.f32 %v758, %v848
  %v850 = vpop.f32.mrf.mxu0
  %851 = vdwg.mxu0
  %v852 = vld [vmem:[%s11] sm:$0xf]
  %v853 = vld [vmem:[%s11 + $0x4] sm:$0xf]
  %v854 = vld [vmem:[%s11 + $0x8] sm:$0xf]
  %v855 = vld [vmem:[%s11 + $0xc] sm:$0xf]
  %v856 = vld [vmem:[%s11 + $0x10] sm:$0xf]
  %v857 = vld [vmem:[%s11 + $0x14] sm:$0xf]
  %v858 = vld [vmem:[%s11 + $0x18] sm:$0xf]
  %v859 = vld [vmem:[%s11 + $0x1c] sm:$0xf]
  %v860 = vld [vmem:[%s11 + $0x20] sm:$0xf]
  %v861 = vld [vmem:[%s11 + $0x24] sm:$0xf]
  %v862 = vld [vmem:[%s11 + $0x28] sm:$0xf]
  %v863 = vld [vmem:[%s11 + $0x2c] sm:$0xf]
  %v864 = vld [vmem:[%s13] sm:$0x1]
  %v866 = vlaneseq
  %v867 = vshrl.u32 %v866, 7
  %v868 = vsub.s32 0, %v867
  %v869 = vrot.slane %v864, %v868
  %v883 = vunpack.c.l.b16 %v852
  %v884 = vunpack.c.l.b16 %v853
  %v885 = vunpack.c.l.b16 %v854
  %v886 = vunpack.c.l.b16 %v855
  %v887 = vunpack.c.l.b16 %v856
  %v888 = vunpack.c.l.b16 %v857
  %v889 = vunpack.c.l.b16 %v858
  %v890 = vunpack.c.l.b16 %v859
  %v891 = vunpack.c.l.b16 %v860
  %v892 = vunpack.c.l.b16 %v861
  %v893 = vunpack.c.l.b16 %v862
  %v894 = vunpack.c.l.b16 %v863
  %v895 = vpack.c.b16 %v884, %v883
  %v896 = vpack.c.b16 %v886, %v885
  %v897 = vpack.c.b16 %v888, %v887
  %v898 = vpack.c.b16 %v890, %v889
  %v899 = vpack.c.b16 %v892, %v891
  %v900 = vpack.c.b16 %v894, %v893
  %907 = vmatprep.subr.bf16.mxu0 0
  %908 = vmatpush1.bf16.msra.mxu0 0
  %909 = vmatprep.subr.bf16.mxu0 0
  %910 = vmatpush1.bf16.msra.mxu0 0
  %911 = vmatprep.subr.bf16.mxu0 0
  %912 = vmatpush1.bf16.msra.mxu0 %v900
  %913 = vmatprep.subr.bf16.mxu0 0
  %914 = vmatpush1.bf16.msra.mxu0 %v899
  %915 = vmatprep.subr.bf16.mxu0 0
  %916 = vmatpush1.bf16.msra.mxu0 %v898
  %917 = vmatprep.subr.bf16.mxu0 0
  %918 = vmatpush1.bf16.msra.mxu0 %v897
  %919 = vmatprep.subr.bf16.mxu0 0
  %920 = vmatpush1.bf16.msra.mxu0 %v896
  %921 = vmatprep.subr.bf16.mxu0 0
  %922 = vmatpush1.bf16.msra.mxu0 %v895
  %923 = vmatprep.subr.bf16.mxu0 0
  %924 = vmatpush2.bf16.msra.mxu0 0
  %925 = vmatprep.subr.bf16.mxu0 0
  %926 = vmatpush2.bf16.msra.mxu0 0
  %927 = vmatprep.subr.bf16.mxu0 0
  %928 = vmatpush2.bf16.msra.mxu0 0
  %929 = vmatprep.subr.bf16.mxu0 0
  %930 = vmatpush2.bf16.msra.mxu0 0
  %931 = vmatprep.subr.bf16.mxu0 0
  %932 = vmatpush2.bf16.msra.mxu0 0
  %933 = vmatprep.subr.bf16.mxu0 0
  %934 = vmatpush2.bf16.msra.mxu0 0
  %935 = vmatprep.subr.bf16.mxu0 0
  %936 = vmatpush2.bf16.msra.mxu0 0
  %937 = vmatprep.subr.bf16.mxu0 0
  %938 = vmatpush2.bf16.msra.mxu0 0
  %939 = vmatprep.mubr.bf16.mxu0 0
  %940 = vmatmul.mubr.bf16.gmra.mxu0 %v798
  %v941 = vpop.f32.mrf.mxu0
  %v942 = vadd.f32 %v869, %v941
  %v943 = vpop.f32.mrf.mxu0
  %v944 = vpop.f32.mrf.mxu0
  %v945 = vadd.f32 %v869, %v944
  %v946 = vpop.f32.mrf.mxu0
  %947 = vmatprep.mubr.bf16.mxu0 0
  %948 = vmatmul.mubr.bf16.gmra.mxu0 %v801
  %v949 = vpop.f32.mrf.mxu0
  %v950 = vadd.f32 %v869, %v949
  %v951 = vpop.f32.mrf.mxu0
  %v952 = vpop.f32.mrf.mxu0
  %v953 = vadd.f32 %v869, %v952
  %v954 = vpop.f32.mrf.mxu0
  %955 = vdwg.mxu0
  %v956 = vxor.u32 %v942, 2147483648
  %v957 = vxor.u32 %v945, 2147483648
  %v958 = vxor.u32 %v950, 2147483648
  %v959 = vxor.u32 %v953, 2147483648
  %v960 = vmul.f32 %v956, 1.442695
  %v961 = vpow.pop %v960
  %v962 = vmul.f32 %v957, 1.442695
  %v963 = vpow.pop %v962
  %v964 = vmul.f32 %v958, 1.442695
  %v965 = vpow.pop %v964
  %v966 = vmul.f32 %v959, 1.442695
  %v967 = vpow.pop %v966
  %v968 = vadd.f32 %v961, 1.0
  %v969 = vadd.f32 %v963, 1.0
  %v970 = vadd.f32 %v965, 1.0
  %v971 = vadd.f32 %v967, 1.0
  %v972 = vrcp.pop %v968
  %v973 = vmul.f32 1.0, %v972
  %v974 = vrcp.pop %v969
  %v975 = vmul.f32 1.0, %v974
  %v976 = vrcp.pop %v970
  %v977 = vmul.f32 1.0, %v976
  %v978 = vrcp.pop %v971
  %v979 = vmul.f32 1.0, %v978
  %v980 = vmul.f32 %v838, %v973
  %v981 = vmul.f32 %v841, %v975
  %v982 = vmul.f32 %v846, %v977
  %v983 = vmul.f32 %v849, %v979
  %v984 = vld [vmem:[%s0] sm:$0x1]
  %v985 = vpack.c.bf16 %v981, %v980
  %v986 = vpack.c.bf16 %v983, %v982
  %v988 = vsel %vm472, %v984, 0
  %990 = vmatprep.subr.bf16.mxu0 0
  %991 = vmatpush1.bf16.msra.mxu0 0
  %992 = vmatprep.subr.bf16.mxu0 0
  %993 = vmatpush1.bf16.msra.mxu0 0
  %994 = vmatprep.subr.bf16.mxu0 0
  %995 = vmatpush1.bf16.msra.mxu0 0
  %996 = vmatprep.subr.bf16.mxu0 0
  %997 = vmatpush1.bf16.msra.mxu0 0
  %998 = vmatprep.subr.bf16.mxu0 0
  %999 = vmatpush1.bf16.msra.mxu0 0
  %1000 = vmatprep.subr.bf16.mxu0 0
  %1001 = vmatpush1.bf16.msra.mxu0 0
  %1002 = vmatprep.subr.bf16.mxu0 0
  %1003 = vmatpush1.bf16.msra.mxu0 %v986
  %1004 = vmatprep.subr.bf16.mxu0 0
  %1005 = vmatpush1.bf16.msra.mxu0 %v985
  %1006 = vmatprep.subr.bf16.mxu0 0
  %1007 = vmatpush2.bf16.msra.mxu0 0
  %1008 = vmatprep.subr.bf16.mxu0 0
  %1009 = vmatpush2.bf16.msra.mxu0 0
  %1010 = vmatprep.subr.bf16.mxu0 0
  %1011 = vmatpush2.bf16.msra.mxu0 0
  %1012 = vmatprep.subr.bf16.mxu0 0
  %1013 = vmatpush2.bf16.msra.mxu0 0
  %1014 = vmatprep.subr.bf16.mxu0 0
  %1015 = vmatpush2.bf16.msra.mxu0 0
  %1016 = vmatprep.subr.bf16.mxu0 0
  %1017 = vmatpush2.bf16.msra.mxu0 0
  %1018 = vmatprep.subr.bf16.mxu0 0
  %1019 = vmatpush2.bf16.msra.mxu0 0
  %1020 = vmatprep.subr.bf16.mxu0 0
  %1021 = vmatpush2.bf16.msra.mxu0 0
  %1022 = vmatprep.mubr.bf16.mxu0 0
  %1023 = vmatmul.mubr.bf16.gmra.mxu0 %v988
  %v1024 = vpop.f32.mrf.mxu0
  %v1025 = vadd.f32 0.0, %v1024
  %v1026 = vpop.f32.mrf.mxu0
  %v1027 = vpop.f32.mrf.mxu0
  %v1028 = vpop.f32.mrf.mxu0
  %1029 = vdwg.mxu0
  %v1030 = vmul.f32 %v1025, 0.0625
  %v1031 = vpack.c.bf16 %v1030, %v1030
  %v1032 = vld [vmem:[%s14] sm:$0xf]
  %v1033 = vld [vmem:[%s14 + $0x4] sm:$0xf]
  %v1034 = vld [vmem:[%s14 + $0x8] sm:$0xf]
  %v1035 = vld [vmem:[%s14 + $0xc] sm:$0xf]
  %v1036 = vld [vmem:[%s14 + $0x10] sm:$0xf]
  %v1037 = vld [vmem:[%s14 + $0x14] sm:$0xf]
  %v1038 = vld [vmem:[%s16] sm:$0x1]
  %v1040 = vlaneseq
  %v1041 = vshrl.u32 %v1040, 7
  %v1042 = vsub.s32 0, %v1041
  %v1043 = vrot.slane %v1038, %v1042
  %v1051 = vunpack.c.l.b16 %v1032
  %v1052 = vunpack.c.l.b16 %v1033
  %v1053 = vunpack.c.l.b16 %v1034
  %v1054 = vunpack.c.l.b16 %v1035
  %v1055 = vunpack.c.l.b16 %v1036
  %v1056 = vunpack.c.l.b16 %v1037
  %v1057 = vpack.c.b16 %v1052, %v1051
  %v1058 = vpack.c.b16 %v1054, %v1053
  %v1059 = vpack.c.b16 %v1056, %v1055
  %v1064 = vsel %vm510, %v1031, 0
  %1066 = vmatprep.subr.bf16.mxu0 0
  %1067 = vmatpush1.bf16.msra.mxu0 0
  %1068 = vmatprep.subr.bf16.mxu0 0
  %1069 = vmatpush1.bf16.msra.mxu0 0
  %1070 = vmatprep.subr.bf16.mxu0 0
  %1071 = vmatpush1.bf16.msra.mxu0 0
  %1072 = vmatprep.subr.bf16.mxu0 0
  %1073 = vmatpush1.bf16.msra.mxu0 0
  %1074 = vmatprep.subr.bf16.mxu0 0
  %1075 = vmatpush1.bf16.msra.mxu0 0
  %1076 = vmatprep.subr.bf16.mxu0 0
  %1077 = vmatpush1.bf16.msra.mxu0 %v1059
  %1078 = vmatprep.subr.bf16.mxu0 0
  %1079 = vmatpush1.bf16.msra.mxu0 %v1058
  %1080 = vmatprep.subr.bf16.mxu0 0
  %1081 = vmatpush1.bf16.msra.mxu0 %v1057
  %1082 = vmatprep.subr.bf16.mxu0 0
  %1083 = vmatpush2.bf16.msra.mxu0 0
  %1084 = vmatprep.subr.bf16.mxu0 0
  %1085 = vmatpush2.bf16.msra.mxu0 0
  %1086 = vmatprep.subr.bf16.mxu0 0
  %1087 = vmatpush2.bf16.msra.mxu0 0
  %1088 = vmatprep.subr.bf16.mxu0 0
  %1089 = vmatpush2.bf16.msra.mxu0 0
  %1090 = vmatprep.subr.bf16.mxu0 0
  %1091 = vmatpush2.bf16.msra.mxu0 0
  %1092 = vmatprep.subr.bf16.mxu0 0
  %1093 = vmatpush2.bf16.msra.mxu0 0
  %1094 = vmatprep.subr.bf16.mxu0 0
  %1095 = vmatpush2.bf16.msra.mxu0 0
  %1096 = vmatprep.subr.bf16.mxu0 0
  %1097 = vmatpush2.bf16.msra.mxu0 0
  %1098 = vmatprep.mubr.bf16.mxu0 0
  %1099 = vmatmul.mubr.bf16.gmra.mxu0 %v1064
  %v1100 = vpop.f32.mrf.mxu0
  %v1101 = vadd.f32 %v1043, %v1100
  %v1102 = vpop.f32.mrf.mxu0
  %v1103 = vpop.f32.mrf.mxu0
  %v1104 = vpop.f32.mrf.mxu0
  %1105 = vdwg.mxu0
  %v1106 = vmax.f32 %v1101, 0.0
  %v1107 = vld [vmem:[%s15] sm:$0xf]
  %v1108 = vld [vmem:[%s15 + $0x4] sm:$0xf]
  %v1109 = vld [vmem:[%s15 + $0x8] sm:$0xf]
  %v1110 = vld [vmem:[%s15 + $0xc] sm:$0xf]
  %v1111 = vld [vmem:[%s15 + $0x10] sm:$0xf]
  %v1112 = vld [vmem:[%s15 + $0x14] sm:$0xf]
  %v1113 = vld [vmem:[%s17] sm:$0x1]
  %v1115 = vlaneseq
  %v1116 = vshrl.u32 %v1115, 7
  %v1117 = vsub.s32 0, %v1116
  %v1118 = vrot.slane %v1113, %v1117
  %v1126 = vunpack.c.l.b16 %v1107
  %v1127 = vunpack.c.l.b16 %v1108
  %v1128 = vunpack.c.l.b16 %v1109
  %v1129 = vunpack.c.l.b16 %v1110
  %v1130 = vunpack.c.l.b16 %v1111
  %v1131 = vunpack.c.l.b16 %v1112
  %v1132 = vpack.c.b16 %v1127, %v1126
  %v1133 = vpack.c.b16 %v1129, %v1128
  %v1134 = vpack.c.b16 %v1131, %v1130
  %1138 = vmatprep.subr.bf16.mxu0 0
  %1139 = vmatpush1.bf16.msra.mxu0 0
  %1140 = vmatprep.subr.bf16.mxu0 0
  %1141 = vmatpush1.bf16.msra.mxu0 0
  %1142 = vmatprep.subr.bf16.mxu0 0
  %1143 = vmatpush1.bf16.msra.mxu0 0
  %1144 = vmatprep.subr.bf16.mxu0 0
  %1145 = vmatpush1.bf16.msra.mxu0 0
  %1146 = vmatprep.subr.bf16.mxu0 0
  %1147 = vmatpush1.bf16.msra.mxu0 0
  %1148 = vmatprep.subr.bf16.mxu0 0
  %1149 = vmatpush1.bf16.msra.mxu0 %v1134
  %1150 = vmatprep.subr.bf16.mxu0 0
  %1151 = vmatpush1.bf16.msra.mxu0 %v1133
  %1152 = vmatprep.subr.bf16.mxu0 0
  %1153 = vmatpush1.bf16.msra.mxu0 %v1132
  %1154 = vmatprep.subr.bf16.mxu0 0
  %1155 = vmatpush2.bf16.msra.mxu0 0
  %1156 = vmatprep.subr.bf16.mxu0 0
  %1157 = vmatpush2.bf16.msra.mxu0 0
  %1158 = vmatprep.subr.bf16.mxu0 0
  %1159 = vmatpush2.bf16.msra.mxu0 0
  %1160 = vmatprep.subr.bf16.mxu0 0
  %1161 = vmatpush2.bf16.msra.mxu0 0
  %1162 = vmatprep.subr.bf16.mxu0 0
  %1163 = vmatpush2.bf16.msra.mxu0 0
  %1164 = vmatprep.subr.bf16.mxu0 0
  %1165 = vmatpush2.bf16.msra.mxu0 0
  %1166 = vmatprep.subr.bf16.mxu0 0
  %1167 = vmatpush2.bf16.msra.mxu0 0
  %1168 = vmatprep.subr.bf16.mxu0 0
  %1169 = vmatpush2.bf16.msra.mxu0 0
  %1170 = vmatprep.mubr.bf16.mxu0 0
  %1171 = vmatmul.mubr.bf16.gmra.mxu0 %v1064
  %v1172 = vpop.f32.mrf.mxu0
  %v1173 = vadd.f32 %v1118, %v1172
  %v1174 = vpop.f32.mrf.mxu0
  %v1175 = vpop.f32.mrf.mxu0
  %v1176 = vpop.f32.mrf.mxu0
  %1177 = vdwg.mxu0
  %v1178 = vmax.f32 %v1173, 0.0
  %v1179 = vld [vmem:[%s18] sm:$0x3]
  %v1180 = vmul.f32 %v1178, 0.5
  %v1181 = vmul.f32 %v1180, 1.442695
  %v1182 = vpow.pop %v1181
  %v1183 = vmul.f32 %v1179, %v1182
  %v1184 = vadd.f32 %v1183, %v1106
  %1185 = vst [vmem:[%s19] sm:$0x3] %v1184
  %s1186 = scalar_lea.vmem %s19, 2
  %1187 = vst [vmem:[%s1186] sm:$0x3] %v1106
  %s1188 = scalar_lea.vmem %s19, 4
  %1189 = vst [vmem:[%s1188] sm:$0x3] %v1178
  // Predicated region
  $region78: #{cnn_forward.1} parent=0 // pred_check
    _
  $region79: #{cnn_forward.1} parent=0 // pred_check_branch
    %1191 = sbr.rel (0) target = $region81
  $region80: #{cnn_forward.1} parent=0 // pred_region
    _
  $region81: #{cnn_forward.1} parent=0 // pred_fallthru
    _
  // Predicated region
  $region82: #{cnn_forward.1} parent=0 // pred_check
    _
  $region83: #{cnn_forward.1} parent=0 // pred_check_branch
    %1193 = sbr.rel (0) target = $region85
  $region84: #{cnn_forward.1} parent=0 // pred_region
    _
  $region85: #{cnn_forward.1} parent=0 // pred_fallthru
    _

</llo_original>
